<compile_context>
chip_gen: v5e
topology: v5e:2x2
jax: 0.10.0
libtpu: 0.0.40
codegen_flags: <defaults>
</compile_context>

<pallas_src>
import math
import jax
import jax.numpy as jnp
from jax import lax
from jax.experimental import pallas as pl
from jax.experimental.pallas import tpu as pltpu

# ---- model config (small, consistent with the module: hidden_dim % 8 == 0) ----
B = 2            # batch
N = 16           # sequence length
D = 64           # hidden_dim
H = 8            # heads
HS = D // H      # head_size (= int(hidden_dim / 8), as in the torch module)
BN = B * N
EPS = 1e-5       # nn.LayerNorm default eps
SCALE = 1.0 / math.sqrt(HS)


def sa_kernel(x_ref, wqkv_ref, bqkv_ref, wmh_ref, bm_ref, gamma_ref, beta_ref, out_ref):
    # TODO(synk): x_mask masking path not implemented (module exercised with mask=None).
    x = x_ref[...]                                                          # (BN, D)

    # --- fused QKV projection: one lane-dense MXU matmul + one bias add ---
    qkv = jnp.dot(x, wqkv_ref[...],
                  preferred_element_type=jnp.float32) + bqkv_ref[...]       # (BN, 3D)

    # --- split into (H*B, N, HS) head/batch stacks, index g = h*B + b ---
    # (static lane slices + leading/sublane regroupings only)
    def stack_heads(off):
        return jnp.concatenate(
            [qkv[:, off + h * HS: off + (h + 1) * HS].reshape(B, N, HS) for h in range(H)],
            axis=0)

    q = stack_heads(0)          # (H*B, N, HS)
    k = stack_heads(D)
    v = stack_heads(2 * D)

    # --- batched attention: one scores einsum, ONE softmax pass, one P@V einsum ---
    s = jnp.einsum('gqd,gkd->gqk', q, k,
                   preferred_element_type=jnp.float32) * SCALE              # (H*B, N, N)
    s = s - jnp.max(s, axis=-1, keepdims=True)
    p = jnp.exp(s)
    p = p * pl.reciprocal(jnp.sum(p, axis=-1, keepdims=True), approx=True)
    o = jnp.einsum('gqk,gkd->gqd', p, v,
                   preferred_element_type=jnp.float32)                      # (H*B, N, HS)

    # --- merge projection without a lane concat: head-batched matmul + sum over heads ---
    o_heads = o.reshape(H, BN, HS)                                          # (H, BN, HS)
    partial = jnp.einsum('htd,hde->hte', o_heads, wmh_ref[...],
                         preferred_element_type=jnp.float32)                # (H, BN, D)
    merged = jnp.sum(partial, axis=0) + bm_ref[...]                         # (BN, D)

    # --- residual (dropout = identity) + LayerNorm with one-pass statistics ---
    r = x + merged
    mean = jnp.mean(r, axis=-1, keepdims=True)
    var = jnp.mean(r * r, axis=-1, keepdims=True) - mean * mean
    y = (r - mean) * lax.rsqrt(var + EPS)
    out_ref[...] = y * gamma_ref[...] + beta_ref[...]


def sa_forward(x, params):
    """x: (B, N, D) float32. params: dict of weights (already transposed) / biases."""
    # Wrapper-side (free, XLA) parameter fusion / re-layout.
    w_qkv_t = jnp.concatenate([params["wq_t"], params["wk_t"], params["wv_t"]], axis=1)  # (D, 3D)
    b_qkv = jnp.concatenate([params["bq"], params["bk"], params["bv"]], axis=1)          # (1, 3D)
    wm_heads = params["wm_t"].reshape(H, HS, D)                                          # (H, HS, D)
    x_flat = x.reshape(BN, D)

    vmem = pl.BlockSpec(memory_space=pltpu.MemorySpace.VMEM)   # whole array resident in VMEM
    out_flat = pl.pallas_call(
        sa_kernel,
        out_shape=jax.ShapeDtypeStruct((BN, D), jnp.float32),
        in_specs=[vmem] * 7,
        out_specs=vmem,
    )(x_flat, w_qkv_t, b_qkv, wm_heads, params["bm"], params["gamma"], params["beta"])
    return out_flat.reshape(B, N, D)


def sa_reference(x, params):
    """Plain-JAX reference mirroring the torch module (eval mode, mask=None)."""
    def linear(t, w_t, b):
        return t @ w_t + b
    b_, n_, _ = x.shape
    q = linear(x, params["wq_t"], params["bq"]).reshape(b_, n_, H, HS).transpose(0, 2, 1, 3)
    k = linear(x, params["wk_t"], params["bk"]).reshape(b_, n_, H, HS).transpose(0, 2, 1, 3)
    v = linear(x, params["wv_t"], params["bv"]).reshape(b_, n_, H, HS).transpose(0, 2, 1, 3)
    scores = jnp.einsum("bhqd,bhkd->bhqk", q, k) / math.sqrt(HS)
    att = jax.nn.softmax(scores, axis=-1)
    atted = jnp.einsum("bhqk,bhkd->bhqd", att, v).transpose(0, 2, 1, 3).reshape(b_, n_, D)
    merged = linear(atted, params["wm_t"], params["bm"])
    r = x + merged
    mean = jnp.mean(r, axis=-1, keepdims=True)
    var = jnp.mean((r - mean) ** 2, axis=-1, keepdims=True)
    return (r - mean) / jnp.sqrt(var + EPS) * params["gamma"] + params["beta"]


def init_params(key):
    ks = jax.random.split(key, 8)
    scale = 0.02
    return {
        "wq_t": scale * jax.random.normal(ks[0], (D, D), jnp.float32),
        "bq":   scale * jax.random.normal(ks[1], (1, D), jnp.float32),
        "wk_t": scale * jax.random.normal(ks[2], (D, D), jnp.float32),
        "bk":   scale * jax.random.normal(ks[3], (1, D), jnp.float32),
        "wv_t": scale * jax.random.normal(ks[4], (D, D), jnp.float32),
        "bv":   scale * jax.random.normal(ks[5], (1, D), jnp.float32),
        "wm_t": scale * jax.random.normal(ks[6], (D, D), jnp.float32),
        "bm":   scale * jax.random.normal(ks[7], (1, D), jnp.float32),
        "gamma": jnp.ones((1, D), jnp.float32),   # nn.LayerNorm default init
        "beta":  jnp.zeros((1, D), jnp.float32),
    }


if __name__ == "__main__":
    key = jax.random.PRNGKey(0)
    k_x, k_p = jax.random.split(key)
    x = jax.random.normal(k_x, (B, N, D), jnp.float32)
    params = init_params(k_p)

    out = jax.block_until_ready(sa_forward(x, params))

    with jax.default_matmul_precision("float32"):   # exact reference matmuls
        ref = sa_reference(x, params)

    assert out.shape == (B, N, D)
    # Tolerance slightly relaxed vs f32-exact because the softmax normalization uses the
    # EUP approximate reciprocal (per the perf review); everything else is f32-accurate.
    assert jnp.allclose(out, ref, atol=5e-3, rtol=5e-3), "mismatch vs reference"

    print("KERNEL_OK")
</pallas_src>

<mosaic_0001>
module attributes {stable_mosaic.version = 11 : i64} {
  func.func @sa_kernel(%arg0: memref<32x64xf32, #tpu.memory_space<vmem>>, %arg1: memref<64x192xf32, #tpu.memory_space<vmem>>, %arg2: memref<1x192xf32, #tpu.memory_space<vmem>>, %arg3: memref<8x8x64xf32, #tpu.memory_space<vmem>>, %arg4: memref<1x64xf32, #tpu.memory_space<vmem>>, %arg5: memref<1x64xf32, #tpu.memory_space<vmem>>, %arg6: memref<1x64xf32, #tpu.memory_space<vmem>>, %arg7: memref<32x64xf32, #tpu.memory_space<vmem>>) attributes {dimension_semantics = [], scalar_prefetch = 0 : i64, scratch_operands = 0 : i64, tpu.core_type = #tpu.core_type<tc>} {
    %c0 = arith.constant 0 : index
    %c0_0 = arith.constant 0 : index
    %0 = vector.load %arg0[%c0, %c0_0] : memref<32x64xf32, #tpu.memory_space<vmem>>, vector<32x64xf32>
    %c0_1 = arith.constant 0 : index
    %c0_2 = arith.constant 0 : index
    %1 = vector.load %arg1[%c0_1, %c0_2] : memref<64x192xf32, #tpu.memory_space<vmem>>, vector<64x192xf32>
    %cst = arith.constant dense<0.000000e+00> : vector<32x192xf32>
    %2 = tpu.matmul %0, %1, %cst {dimension_numbers = #tpu.dot_dimension_numbers<[1], [0], [0], [1], [0, 0, 1, 1], [], []>} : vector<32x64xf32>, vector<64x192xf32>, vector<32x192xf32> -> vector<32x192xf32>
    %c0_3 = arith.constant 0 : index
    %c0_4 = arith.constant 0 : index
    %3 = vector.load %arg2[%c0_3, %c0_4] : memref<1x192xf32, #tpu.memory_space<vmem>>, vector<1x192xf32>
    %4 = vector.broadcast %3 : vector<1x192xf32> to vector<32x192xf32>
    %5 = arith.addf %2, %4 : vector<32x192xf32>
    %6 = vector.extract_strided_slice %5 {offsets = [0, 0], sizes = [32, 8], strides = [1, 1]} : vector<32x192xf32> to vector<32x8xf32>
    %7 = vector.shape_cast %6 : vector<32x8xf32> to vector<2x16x8xf32>
    %8 = vector.extract_strided_slice %5 {offsets = [0, 8], sizes = [32, 8], strides = [1, 1]} : vector<32x192xf32> to vector<32x8xf32>
    %9 = vector.shape_cast %8 : vector<32x8xf32> to vector<2x16x8xf32>
    %10 = vector.extract_strided_slice %5 {offsets = [0, 16], sizes = [32, 8], strides = [1, 1]} : vector<32x192xf32> to vector<32x8xf32>
    %11 = vector.shape_cast %10 : vector<32x8xf32> to vector<2x16x8xf32>
    %12 = vector.extract_strided_slice %5 {offsets = [0, 24], sizes = [32, 8], strides = [1, 1]} : vector<32x192xf32> to vector<32x8xf32>
    %13 = vector.shape_cast %12 : vector<32x8xf32> to vector<2x16x8xf32>
    %14 = vector.extract_strided_slice %5 {offsets = [0, 32], sizes = [32, 8], strides = [1, 1]} : vector<32x192xf32> to vector<32x8xf32>
    %15 = vector.shape_cast %14 : vector<32x8xf32> to vector<2x16x8xf32>
    %16 = vector.extract_strided_slice %5 {offsets = [0, 40], sizes = [32, 8], strides = [1, 1]} : vector<32x192xf32> to vector<32x8xf32>
    %17 = vector.shape_cast %16 : vector<32x8xf32> to vector<2x16x8xf32>
    %18 = vector.extract_strided_slice %5 {offsets = [0, 48], sizes = [32, 8], strides = [1, 1]} : vector<32x192xf32> to vector<32x8xf32>
    %19 = vector.shape_cast %18 : vector<32x8xf32> to vector<2x16x8xf32>
    %20 = vector.extract_strided_slice %5 {offsets = [0, 56], sizes = [32, 8], strides = [1, 1]} : vector<32x192xf32> to vector<32x8xf32>
    %21 = vector.shape_cast %20 : vector<32x8xf32> to vector<2x16x8xf32>
    %22 = tpu.concatenate %7, %9, %11, %13, %15, %17, %19, %21 in 0 : vector<2x16x8xf32>, vector<2x16x8xf32>, vector<2x16x8xf32>, vector<2x16x8xf32>, vector<2x16x8xf32>, vector<2x16x8xf32>, vector<2x16x8xf32>, vector<2x16x8xf32> -> vector<16x16x8xf32>
    %23 = vector.extract_strided_slice %5 {offsets = [0, 64], sizes = [32, 8], strides = [1, 1]} : vector<32x192xf32> to vector<32x8xf32>
    %24 = vector.shape_cast %23 : vector<32x8xf32> to vector<2x16x8xf32>
    %25 = vector.extract_strided_slice %5 {offsets = [0, 72], sizes = [32, 8], strides = [1, 1]} : vector<32x192xf32> to vector<32x8xf32>
    %26 = vector.shape_cast %25 : vector<32x8xf32> to vector<2x16x8xf32>
    %27 = vector.extract_strided_slice %5 {offsets = [0, 80], sizes = [32, 8], strides = [1, 1]} : vector<32x192xf32> to vector<32x8xf32>
    %28 = vector.shape_cast %27 : vector<32x8xf32> to vector<2x16x8xf32>
    %29 = vector.extract_strided_slice %5 {offsets = [0, 88], sizes = [32, 8], strides = [1, 1]} : vector<32x192xf32> to vector<32x8xf32>
    %30 = vector.shape_cast %29 : vector<32x8xf32> to vector<2x16x8xf32>
    %31 = vector.extract_strided_slice %5 {offsets = [0, 96], sizes = [32, 8], strides = [1, 1]} : vector<32x192xf32> to vector<32x8xf32>
    %32 = vector.shape_cast %31 : vector<32x8xf32> to vector<2x16x8xf32>
    %33 = vector.extract_strided_slice %5 {offsets = [0, 104], sizes = [32, 8], strides = [1, 1]} : vector<32x192xf32> to vector<32x8xf32>
    %34 = vector.shape_cast %33 : vector<32x8xf32> to vector<2x16x8xf32>
    %35 = vector.extract_strided_slice %5 {offsets = [0, 112], sizes = [32, 8], strides = [1, 1]} : vector<32x192xf32> to vector<32x8xf32>
    %36 = vector.shape_cast %35 : vector<32x8xf32> to vector<2x16x8xf32>
    %37 = vector.extract_strided_slice %5 {offsets = [0, 120], sizes = [32, 8], strides = [1, 1]} : vector<32x192xf32> to vector<32x8xf32>
    %38 = vector.shape_cast %37 : vector<32x8xf32> to vector<2x16x8xf32>
    %39 = tpu.concatenate %24, %26, %28, %30, %32, %34, %36, %38 in 0 : vector<2x16x8xf32>, vector<2x16x8xf32>, vector<2x16x8xf32>, vector<2x16x8xf32>, vector<2x16x8xf32>, vector<2x16x8xf32>, vector<2x16x8xf32>, vector<2x16x8xf32> -> vector<16x16x8xf32>
    %40 = vector.extract_strided_slice %5 {offsets = [0, 128], sizes = [32, 8], strides = [1, 1]} : vector<32x192xf32> to vector<32x8xf32>
    %41 = vector.shape_cast %40 : vector<32x8xf32> to vector<2x16x8xf32>
    %42 = vector.extract_strided_slice %5 {offsets = [0, 136], sizes = [32, 8], strides = [1, 1]} : vector<32x192xf32> to vector<32x8xf32>
    %43 = vector.shape_cast %42 : vector<32x8xf32> to vector<2x16x8xf32>
    %44 = vector.extract_strided_slice %5 {offsets = [0, 144], sizes = [32, 8], strides = [1, 1]} : vector<32x192xf32> to vector<32x8xf32>
    %45 = vector.shape_cast %44 : vector<32x8xf32> to vector<2x16x8xf32>
    %46 = vector.extract_strided_slice %5 {offsets = [0, 152], sizes = [32, 8], strides = [1, 1]} : vector<32x192xf32> to vector<32x8xf32>
    %47 = vector.shape_cast %46 : vector<32x8xf32> to vector<2x16x8xf32>
    %48 = vector.extract_strided_slice %5 {offsets = [0, 160], sizes = [32, 8], strides = [1, 1]} : vector<32x192xf32> to vector<32x8xf32>
    %49 = vector.shape_cast %48 : vector<32x8xf32> to vector<2x16x8xf32>
    %50 = vector.extract_strided_slice %5 {offsets = [0, 168], sizes = [32, 8], strides = [1, 1]} : vector<32x192xf32> to vector<32x8xf32>
    %51 = vector.shape_cast %50 : vector<32x8xf32> to vector<2x16x8xf32>
    %52 = vector.extract_strided_slice %5 {offsets = [0, 176], sizes = [32, 8], strides = [1, 1]} : vector<32x192xf32> to vector<32x8xf32>
    %53 = vector.shape_cast %52 : vector<32x8xf32> to vector<2x16x8xf32>
    %54 = vector.extract_strided_slice %5 {offsets = [0, 184], sizes = [32, 8], strides = [1, 1]} : vector<32x192xf32> to vector<32x8xf32>
    %55 = vector.shape_cast %54 : vector<32x8xf32> to vector<2x16x8xf32>
    %56 = tpu.concatenate %41, %43, %45, %47, %49, %51, %53, %55 in 0 : vector<2x16x8xf32>, vector<2x16x8xf32>, vector<2x16x8xf32>, vector<2x16x8xf32>, vector<2x16x8xf32>, vector<2x16x8xf32>, vector<2x16x8xf32>, vector<2x16x8xf32> -> vector<16x16x8xf32>
    "tpu.trace_start"() <{level = 10 : i32, message = "gqd,gkd->gqk"}> : () -> ()
    %cst_5 = arith.constant dense<0.000000e+00> : vector<16x16x16xf32>
    %57 = tpu.matmul %22, %39, %cst_5 {dimension_numbers = #tpu.dot_dimension_numbers<[2], [2], [1], [1], [0, 0, 0, 1, 1, 1], [0], [0]>} : vector<16x16x8xf32>, vector<16x16x8xf32>, vector<16x16x16xf32> -> vector<16x16x16xf32>
    "tpu.trace_stop"() : () -> ()
    %cst_6 = arith.constant 0.353553385 : f32
    %58 = vector.broadcast %cst_6 : f32 to vector<16x16x16xf32>
    %59 = arith.mulf %57, %58 : vector<16x16x16xf32>
    %cst_7 = arith.constant dense<0xFF800000> : vector<16x16xf32>
    %60 = vector.multi_reduction <maximumf>, %59, %cst_7 [2] : vector<16x16x16xf32> to vector<16x16xf32>
    %61 = vector.shape_cast %60 : vector<16x16xf32> to vector<16x16x1xf32>
    %62 = vector.broadcast %61 : vector<16x16x1xf32> to vector<16x16x16xf32>
    %63 = arith.subf %59, %62 : vector<16x16x16xf32>
    %64 = math.exp %63 : vector<16x16x16xf32>
    %cst_8 = arith.constant dense<0.000000e+00> : vector<16x16xf32>
    %65 = vector.multi_reduction <add>, %64, %cst_8 [2] : vector<16x16x16xf32> to vector<16x16xf32>
    %66 = vector.shape_cast %65 : vector<16x16xf32> to vector<16x16x1xf32>
    %67 = tpu.reciprocal %66 {approx = true} : vector<16x16x1xf32> -> vector<16x16x1xf32>
    %68 = vector.broadcast %67 : vector<16x16x1xf32> to vector<16x16x16xf32>
    %69 = arith.mulf %64, %68 : vector<16x16x16xf32>
    "tpu.trace_start"() <{level = 10 : i32, message = "gqk,gkd->gqd"}> : () -> ()
    %cst_9 = arith.constant dense<0.000000e+00> : vector<16x16x8xf32>
    %70 = tpu.matmul %69, %56, %cst_9 {dimension_numbers = #tpu.dot_dimension_numbers<[2], [1], [1], [2], [0, 0, 0, 1, 1, 2], [0], [0]>} : vector<16x16x16xf32>, vector<16x16x8xf32>, vector<16x16x8xf32> -> vector<16x16x8xf32>
    "tpu.trace_stop"() : () -> ()
    %71 = vector.shape_cast %70 : vector<16x16x8xf32> to vector<8x32x8xf32>
    %c0_10 = arith.constant 0 : index
    %c0_11 = arith.constant 0 : index
    %c0_12 = arith.constant 0 : index
    %72 = vector.load %arg3[%c0_10, %c0_11, %c0_12] : memref<8x8x64xf32, #tpu.memory_space<vmem>>, vector<8x8x64xf32>
    "tpu.trace_start"() <{level = 10 : i32, message = "htd,hde->hte"}> : () -> ()
    %cst_13 = arith.constant dense<0.000000e+00> : vector<8x32x64xf32>
    %73 = tpu.matmul %71, %72, %cst_13 {dimension_numbers = #tpu.dot_dimension_numbers<[2], [1], [1], [2], [0, 0, 0, 1, 1, 2], [0], [0]>} : vector<8x32x8xf32>, vector<8x8x64xf32>, vector<8x32x64xf32> -> vector<8x32x64xf32>
    "tpu.trace_stop"() : () -> ()
    %cst_14 = arith.constant dense<0.000000e+00> : vector<32x64xf32>
    %74 = vector.multi_reduction <add>, %73, %cst_14 [0] : vector<8x32x64xf32> to vector<32x64xf32>
    %c0_15 = arith.constant 0 : index
    %c0_16 = arith.constant 0 : index
    %75 = vector.load %arg4[%c0_15, %c0_16] : memref<1x64xf32, #tpu.memory_space<vmem>>, vector<1x64xf32>
    %76 = vector.broadcast %75 : vector<1x64xf32> to vector<32x64xf32>
    %77 = arith.addf %74, %76 : vector<32x64xf32>
    %78 = arith.addf %0, %77 : vector<32x64xf32>
    %cst_17 = arith.constant dense<0.000000e+00> : vector<32xf32>
    %79 = vector.multi_reduction <add>, %78, %cst_17 [1] : vector<32x64xf32> to vector<32xf32>
    %80 = vector.shape_cast %79 : vector<32xf32> to vector<32x1xf32>
    %cst_18 = arith.constant 6.400000e+01 : f32
    %81 = vector.broadcast %cst_18 : f32 to vector<32x1xf32>
    %82 = arith.divf %80, %81 : vector<32x1xf32>
    %83 = arith.mulf %78, %78 : vector<32x64xf32>
    %cst_19 = arith.constant dense<0.000000e+00> : vector<32xf32>
    %84 = vector.multi_reduction <add>, %83, %cst_19 [1] : vector<32x64xf32> to vector<32xf32>
    %85 = vector.shape_cast %84 : vector<32xf32> to vector<32x1xf32>
    %cst_20 = arith.constant 6.400000e+01 : f32
    %86 = vector.broadcast %cst_20 : f32 to vector<32x1xf32>
    %87 = arith.divf %85, %86 : vector<32x1xf32>
    %88 = arith.mulf %82, %82 : vector<32x1xf32>
    %89 = arith.subf %87, %88 : vector<32x1xf32>
    %90 = vector.broadcast %82 : vector<32x1xf32> to vector<32x64xf32>
    %91 = arith.subf %78, %90 : vector<32x64xf32>
    %cst_21 = arith.constant 9.99999974E-6 : f32
    %92 = vector.broadcast %cst_21 : f32 to vector<32x1xf32>
    %93 = arith.addf %89, %92 : vector<32x1xf32>
    %94 = math.rsqrt %93 : vector<32x1xf32>
    %95 = vector.broadcast %94 : vector<32x1xf32> to vector<32x64xf32>
    %96 = arith.mulf %91, %95 : vector<32x64xf32>
    %c0_22 = arith.constant 0 : index
    %c0_23 = arith.constant 0 : index
    %97 = vector.load %arg5[%c0_22, %c0_23] : memref<1x64xf32, #tpu.memory_space<vmem>>, vector<1x64xf32>
    %98 = vector.broadcast %97 : vector<1x64xf32> to vector<32x64xf32>
    %99 = arith.mulf %96, %98 : vector<32x64xf32>
    %c0_24 = arith.constant 0 : index
    %c0_25 = arith.constant 0 : index
    %100 = vector.load %arg6[%c0_24, %c0_25] : memref<1x64xf32, #tpu.memory_space<vmem>>, vector<1x64xf32>
    %101 = vector.broadcast %100 : vector<1x64xf32> to vector<32x64xf32>
    %102 = arith.addf %99, %101 : vector<32x64xf32>
    %c0_26 = arith.constant 0 : index
    %c0_27 = arith.constant 0 : index
    %103 = vector.load %arg7[%c0_26, %c0_27] : memref<32x64xf32, #tpu.memory_space<vmem>>, vector<32x64xf32>
    tpu.vector_store %arg7[%c0_26, %c0_27], %102 {strides = array<i32>} : memref<32x64xf32, #tpu.memory_space<vmem>>, vector<32x64xf32>,
    return
  }
}

</mosaic_0001>

<llo_original>
// kernel: tpu_custom_call.1
$region0: #{tpu_custom_call.1}
  #allocation0 [shape = 'u32[]', space=smem, size = 0x4, offset = 0x4, fixed_abs, tag = 'smem constant byte address 0x4 - core index']
  #allocation1 [shape = 'u32[72,128]{1,0:T(1,128)}', space=vmem, size = 0x9000, scoped, tag = 'internal scratch']
  %s0 = inlined_call_operand.hbm [shape: f32[32,64], index: 0, kind: input, shape index: {}]
  %s1 = inlined_call_operand.hbm [shape: f32[64,192], index: 1, kind: input, shape index: {}]
  %s2 = inlined_call_operand.hbm [shape: f32[1,192], index: 2, kind: input, shape index: {}]
  %s3 = inlined_call_operand.hbm [shape: f32[8,8,64], index: 3, kind: input, shape index: {}]
  %s4 = inlined_call_operand.vmem [shape: f32[1,64], index: 4, kind: input, shape index: {}]
  %s5 = inlined_call_operand.vmem [shape: f32[1,64], index: 5, kind: input, shape index: {}]
  %s6 = inlined_call_operand.vmem [shape: f32[1,64], index: 6, kind: input, shape index: {}]
  %s7 = inlined_call_operand.hbm [shape: f32[32,64], index: 7, kind: output, shape index: {}]
  %s8 = sld [smem:[#allocation0]]
  $region54: #{tpu_custom_call.1} parent=0
    _
  %s10 = ssub.s32 1, %s8
  %s11 = scalar_select 0, %s10, %s8
  $region1: #{tpu_custom_call.1} parent=0
    #allocation2 [shape = 'u8[16384]{0}', space=vmem, size = 0x4000, scoped, tag = 'input window, operand 0, single buffered']
    #allocation3 [shape = 's32[1]{0}', space=sflag, size = 0x4, scoped, tag = 'scoped memory for tpu_custom_call.1']
    #allocation4 [shape = 's32[1]{0}', space=sflag, size = 0x4, scoped, tag = 'scoped memory for tpu_custom_call.1']
    #allocation5 [shape = 'u8[65536]{0}', space=vmem, size = 0x10000, scoped, tag = 'input window, operand 1, single buffered']
    #allocation6 [shape = 's32[1]{0}', space=sflag, size = 0x4, scoped, tag = 'scoped memory for tpu_custom_call.1']
    #allocation7 [shape = 'u8[1024]{0}', space=vmem, size = 0x400, scoped, tag = 'input window, operand 2, single buffered']
    #allocation8 [shape = 'u8[32768]{0}', space=vmem, size = 0x8000, scoped, tag = 'input window, operand 3, single buffered']
    #allocation9 [shape = 's32[1]{0}', space=sflag, size = 0x4, scoped, tag = 'scoped memory for tpu_custom_call.1']
    #allocation10 [shape = 'u8[16384]{0}', space=vmem, size = 0x4000, scoped, tag = 'output window, operand 0, single buffered']
    %12 = vsyncpa [#allocation3], 0
    %13 = vsyncpa [#allocation6], 0
    %14 = vsyncpa [#allocation9], 0
    %15 = vsyncpa [#allocation4], 0
    // Predicated region
    $region2: #{tpu_custom_call.1} parent=1 // pred_check
      _
    $region3: #{tpu_custom_call.1} parent=1 // pred_check_branch
      %17 = sbr.rel (0) target = $region5
    $region4: #{tpu_custom_call.1} parent=1 // pred_region
      %19 = vsyncadd [#allocation3], 0
      %s20 = sshll.u32 %s0, 4
      %s21 = int_to_ptr.hbm [resolvable:$true] %s20
      %s22 = sshll.u32 [#allocation2], 4
      %s23 = int_to_ptr.vmem [resolvable:$true] %s22
      %28 = dma.hbm_to_vmem [thread:$0]  %s21, 512, %s23, [#allocation3], 128, 128, 8
    $region5: #{tpu_custom_call.1} parent=1 // pred_fallthru
      _
    // Predicated region
    $region6: #{tpu_custom_call.1} parent=1 // pred_check
      _
    $region7: #{tpu_custom_call.1} parent=1 // pred_check_branch
      %30 = sbr.rel (0) target = $region9
    $region8: #{tpu_custom_call.1} parent=1 // pred_region
      %32 = vsyncadd [#allocation6], 0
      %s33 = sshll.u32 %s1, 4
      %s34 = int_to_ptr.hbm [resolvable:$true] %s33
      %s35 = sshll.u32 [#allocation5], 4
      %s36 = int_to_ptr.vmem [resolvable:$true] %s35
      %41 = dma.hbm_to_vmem [thread:$0]  %s34, 2048, %s36, [#allocation6], 256, 256, 16
    $region9: #{tpu_custom_call.1} parent=1 // pred_fallthru
      _
    // Predicated region
    $region10: #{tpu_custom_call.1} parent=1 // pred_check
      _
    $region11: #{tpu_custom_call.1} parent=1 // pred_check_branch
      %43 = sbr.rel (0) target = $region13
    $region12: #{tpu_custom_call.1} parent=1 // pred_region
      %45 = vsyncadd [#allocation6], 0
      %s47 = sshll.u32 %s2, 4
      %s48 = int_to_ptr.hbm [resolvable:$true] %s47
      %s49 = sshll.u32 [#allocation7], 4
      %s50 = int_to_ptr.vmem [resolvable:$true] %s49
      %52 = dma.hbm_to_vmem [thread:$0]  %s48, 32, %s50, [#allocation6]
    $region13: #{tpu_custom_call.1} parent=1 // pred_fallthru
      _
    // Predicated region
    $region14: #{tpu_custom_call.1} parent=1 // pred_check
      _
    $region15: #{tpu_custom_call.1} parent=1 // pred_check_branch
      %54 = sbr.rel (0) target = $region17
    $region16: #{tpu_custom_call.1} parent=1 // pred_region
      %56 = vsyncadd [#allocation9], 0
      %s57 = sshll.u32 %s3, 4
      %s58 = int_to_ptr.hbm [resolvable:$true] %s57
      %s59 = sshll.u32 [#allocation8], 4
      %s60 = int_to_ptr.vmem [resolvable:$true] %s59
      %65 = dma.hbm_to_vmem [thread:$0]  %s58, 1024, %s60, [#allocation9], 128, 128, 8
    $region17: #{tpu_custom_call.1} parent=1 // pred_fallthru
      _
    // Predicated region
    $region18: #{tpu_custom_call.1} parent=1 // pred_check
      _
    $region19: #{tpu_custom_call.1} parent=1 // pred_check_branch
      %67 = sbr.rel (0) target = $region21
    $region20: #{tpu_custom_call.1} parent=1 // pred_region
      _
    $region21: #{tpu_custom_call.1} parent=1 // pred_fallthru
      _
    // Predicated region
    $region22: #{tpu_custom_call.1} parent=1 // pred_check
      _
    $region23: #{tpu_custom_call.1} parent=1 // pred_check_branch
      %69 = sbr.rel (0) target = $region25
    $region24: #{tpu_custom_call.1} parent=1 // pred_region
      _
    $region25: #{tpu_custom_call.1} parent=1 // pred_fallthru
      _
    // Predicated region
    $region26: #{tpu_custom_call.1} parent=1 // pred_check
      _
    $region27: #{tpu_custom_call.1} parent=1 // pred_check_branch
      %71 = sbr.rel (0) target = $region29
    $region28: #{tpu_custom_call.1} parent=1 // pred_region
      _
    $region29: #{tpu_custom_call.1} parent=1 // pred_fallthru
      _
    // Predicated region
    $region30: #{tpu_custom_call.1} parent=1 // pred_check
      _
    $region31: #{tpu_custom_call.1} parent=1 // pred_check_branch
      %73 = sbr.rel (0) target = $region33
    $region32: #{tpu_custom_call.1} parent=1 // pred_region
      %75 = dma.done [#allocation3], 512
    $region33: #{tpu_custom_call.1} parent=1 // pred_fallthru
      _
    // Predicated region
    $region34: #{tpu_custom_call.1} parent=1 // pred_check
      _
    $region35: #{tpu_custom_call.1} parent=1 // pred_check_branch
      %77 = sbr.rel (0) target = $region37
    $region36: #{tpu_custom_call.1} parent=1 // pred_region
      %79 = dma.done [#allocation6], 2048
    $region37: #{tpu_custom_call.1} parent=1 // pred_fallthru
      _
    // Predicated region
    $region38: #{tpu_custom_call.1} parent=1 // pred_check
      _
    $region39: #{tpu_custom_call.1} parent=1 // pred_check_branch
      %81 = sbr.rel (0) target = $region41
    $region40: #{tpu_custom_call.1} parent=1 // pred_region
      %83 = dma.done [#allocation6], 32
    $region41: #{tpu_custom_call.1} parent=1 // pred_fallthru
      _
    // Predicated region
    $region42: #{tpu_custom_call.1} parent=1 // pred_check
      _
    $region43: #{tpu_custom_call.1} parent=1 // pred_check_branch
      %85 = sbr.rel (0) target = $region45
    $region44: #{tpu_custom_call.1} parent=1 // pred_region
      %87 = dma.done [#allocation9], 1024
    $region45: #{tpu_custom_call.1} parent=1 // pred_fallthru
      _
    %v88 = vld [vmem:[#allocation2] sm:$0xff]
    %v89 = vld [vmem:[#allocation2 + $0x8] sm:$0xff]
    %v90 = vld [vmem:[#allocation2 + $0x10] sm:$0xff]
    %v91 = vld [vmem:[#allocation2 + $0x18] sm:$0xff]
    %v92 = vld [vmem:[#allocation5] sm:$0xff]
    %v93 = vld [vmem:[#allocation5 + $0x8] sm:$0xff]
    %v94 = vld [vmem:[#allocation5 + $0x10] sm:$0xff]
    %v95 = vld [vmem:[#allocation5 + $0x18] sm:$0xff]
    %v96 = vld [vmem:[#allocation5 + $0x20] sm:$0xff]
    %v97 = vld [vmem:[#allocation5 + $0x28] sm:$0xff]
    %v98 = vld [vmem:[#allocation5 + $0x30] sm:$0xff]
    %v99 = vld [vmem:[#allocation5 + $0x38] sm:$0xff]
    %v100 = vld [vmem:[#allocation5 + $0x40] sm:$0xff]
    %v101 = vld [vmem:[#allocation5 + $0x48] sm:$0xff]
    %v102 = vld [vmem:[#allocation5 + $0x50] sm:$0xff]
    %v103 = vld [vmem:[#allocation5 + $0x58] sm:$0xff]
    %v104 = vld [vmem:[#allocation5 + $0x60] sm:$0xff]
    %v105 = vld [vmem:[#allocation5 + $0x68] sm:$0xff]
    %v106 = vld [vmem:[#allocation5 + $0x70] sm:$0xff]
    %v107 = vld [vmem:[#allocation5 + $0x78] sm:$0xff]
    %v108 = vld [vmem:[#allocation7] sm:$0x3]
    %v110 = vperm.slane %v108, 0
    %v111 = vperm.slane %v108, 1
    %vm114 = vcmask 523264
    %v116 = vsel %vm114, %v88, 0
    %v119 = vsel %vm114, %v89, 0
    %v122 = vsel %vm114, %v90, 0
    %v125 = vsel %vm114, %v91, 0
    %127 = vmatpush.msra.mxu0 0.0
    %128 = vmatpush.msra.mxu0 0.0
    %129 = vmatpush.msra.mxu0 0.0
    %130 = vmatpush.msra.mxu0 0.0
    %131 = vmatpush.msra.mxu0 0.0
    %132 = vmatpush.msra.mxu0 0.0
    %133 = vmatpush.msra.mxu0 0.0
    %134 = vmatpush.msra.mxu0 0.0
    %135 = vmatpush.msra.mxu0 %v106
    %136 = vmatpush.msra.mxu0 %v104
    %137 = vmatpush.msra.mxu0 %v102
    %138 = vmatpush.msra.mxu0 %v100
    %139 = vmatpush.msra.mxu0 %v98
    %140 = vmatpush.msra.mxu0 %v96
    %141 = vmatpush.msra.mxu0 %v94
    %142 = vmatpush.msra.mxu0 %v92
    %143 = vmatmul.f32.gmra.mxu0 %v116
    %v144 = vpop.f32.mrf.mxu0
    %v145 = vadd.f32 %v110, %v144
    %146 = vmatmul.f32.gmra.mxu0 %v119
    %v147 = vpop.f32.mrf.mxu0
    %v148 = vadd.f32 %v110, %v147
    %149 = vmatmul.f32.gmra.mxu0 %v122
    %v150 = vpop.f32.mrf.mxu0
    %v151 = vadd.f32 %v110, %v150
    %152 = vmatmul.f32.gmra.mxu0 %v125
    %v153 = vpop.f32.mrf.mxu0
    %v154 = vadd.f32 %v110, %v153
    %155 = vdwg.mxu0
    %156 = vmatpush.msra.mxu0 0.0
    %157 = vmatpush.msra.mxu0 0.0
    %158 = vmatpush.msra.mxu0 0.0
    %159 = vmatpush.msra.mxu0 0.0
    %160 = vmatpush.msra.mxu0 0.0
    %161 = vmatpush.msra.mxu0 0.0
    %162 = vmatpush.msra.mxu0 0.0
    %163 = vmatpush.msra.mxu0 0.0
    %164 = vmatpush.msra.mxu0 %v107
    %165 = vmatpush.msra.mxu0 %v105
    %166 = vmatpush.msra.mxu0 %v103
    %167 = vmatpush.msra.mxu0 %v101
    %168 = vmatpush.msra.mxu0 %v99
    %169 = vmatpush.msra.mxu0 %v97
    %170 = vmatpush.msra.mxu0 %v95
    %171 = vmatpush.msra.mxu0 %v93
    %172 = vmatmul.f32.gmra.mxu0 %v116
    %v173 = vpop.f32.mrf.mxu0
    %v174 = vadd.f32 %v111, %v173
    %175 = vmatmul.f32.gmra.mxu0 %v119
    %v176 = vpop.f32.mrf.mxu0
    %v177 = vadd.f32 %v111, %v176
    %178 = vmatmul.f32.gmra.mxu0 %v122
    %v179 = vpop.f32.mrf.mxu0
    %v180 = vadd.f32 %v111, %v179
    %181 = vmatmul.f32.gmra.mxu0 %v125
    %v182 = vpop.f32.mrf.mxu0
    %v183 = vadd.f32 %v111, %v182
    %184 = vdwg.mxu0
    %189 = vrot.lane.b32.xlu0 %v145, 120
    %v190 = vpop.permute.xlu0 %189
    %191 = vrot.lane.b32.xlu0 %v148, 120
    %v192 = vpop.permute.xlu0 %191
    %193 = vrot.lane.b32.xlu0 %v151, 120
    %v194 = vpop.permute.xlu0 %193
    %195 = vrot.lane.b32.xlu0 %v154, 120
    %v196 = vpop.permute.xlu0 %195
    %197 = vrot.lane.b32.xlu0 %v145, 112
    %v198 = vpop.permute.xlu0 %197
    %199 = vrot.lane.b32.xlu0 %v148, 112
    %v200 = vpop.permute.xlu0 %199
    %201 = vrot.lane.b32.xlu0 %v151, 112
    %v202 = vpop.permute.xlu0 %201
    %203 = vrot.lane.b32.xlu0 %v154, 112
    %v204 = vpop.permute.xlu0 %203
    %205 = vrot.lane.b32.xlu0 %v145, 104
    %v206 = vpop.permute.xlu0 %205
    %207 = vrot.lane.b32.xlu0 %v148, 104
    %v208 = vpop.permute.xlu0 %207
    %209 = vrot.lane.b32.xlu0 %v151, 104
    %v210 = vpop.permute.xlu0 %209
    %211 = vrot.lane.b32.xlu0 %v154, 104
    %v212 = vpop.permute.xlu0 %211
    %213 = vrot.lane.b32.xlu0 %v145, 96
    %v214 = vpop.permute.xlu0 %213
    %215 = vrot.lane.b32.xlu0 %v148, 96
    %v216 = vpop.permute.xlu0 %215
    %217 = vrot.lane.b32.xlu0 %v151, 96
    %v218 = vpop.permute.xlu0 %217
    %219 = vrot.lane.b32.xlu0 %v154, 96
    %v220 = vpop.permute.xlu0 %219
    %221 = vrot.lane.b32.xlu0 %v145, 88
    %v222 = vpop.permute.xlu0 %221
    %223 = vrot.lane.b32.xlu0 %v148, 88
    %v224 = vpop.permute.xlu0 %223
    %225 = vrot.lane.b32.xlu0 %v151, 88
    %v226 = vpop.permute.xlu0 %225
    %227 = vrot.lane.b32.xlu0 %v154, 88
    %v228 = vpop.permute.xlu0 %227
    %229 = vrot.lane.b32.xlu0 %v145, 80
    %v230 = vpop.permute.xlu0 %229
    %231 = vrot.lane.b32.xlu0 %v148, 80
    %v232 = vpop.permute.xlu0 %231
    %233 = vrot.lane.b32.xlu0 %v151, 80
    %v234 = vpop.permute.xlu0 %233
    %235 = vrot.lane.b32.xlu0 %v154, 80
    %v236 = vpop.permute.xlu0 %235
    %237 = vrot.lane.b32.xlu0 %v145, 72
    %v238 = vpop.permute.xlu0 %237
    %239 = vrot.lane.b32.xlu0 %v148, 72
    %v240 = vpop.permute.xlu0 %239
    %241 = vrot.lane.b32.xlu0 %v151, 72
    %v242 = vpop.permute.xlu0 %241
    %243 = vrot.lane.b32.xlu0 %v154, 72
    %v244 = vpop.permute.xlu0 %243
    %249 = vrot.lane.b32.xlu0 %v174, 120
    %v250 = vpop.permute.xlu0 %249
    %251 = vrot.lane.b32.xlu0 %v177, 120
    %v252 = vpop.permute.xlu0 %251
    %253 = vrot.lane.b32.xlu0 %v180, 120
    %v254 = vpop.permute.xlu0 %253
    %255 = vrot.lane.b32.xlu0 %v183, 120
    %v256 = vpop.permute.xlu0 %255
    %261 = vrot.lane.b32.xlu0 %v174, 112
    %v262 = vpop.permute.xlu0 %261
    %263 = vrot.lane.b32.xlu0 %v177, 112
    %v264 = vpop.permute.xlu0 %263
    %265 = vrot.lane.b32.xlu0 %v180, 112
    %v266 = vpop.permute.xlu0 %265
    %267 = vrot.lane.b32.xlu0 %v183, 112
    %v268 = vpop.permute.xlu0 %267
    %273 = vrot.lane.b32.xlu0 %v174, 104
    %v274 = vpop.permute.xlu0 %273
    %275 = vrot.lane.b32.xlu0 %v177, 104
    %v276 = vpop.permute.xlu0 %275
    %277 = vrot.lane.b32.xlu0 %v180, 104
    %v278 = vpop.permute.xlu0 %277
    %279 = vrot.lane.b32.xlu0 %v183, 104
    %v280 = vpop.permute.xlu0 %279
    %285 = vrot.lane.b32.xlu0 %v174, 96
    %v286 = vpop.permute.xlu0 %285
    %287 = vrot.lane.b32.xlu0 %v177, 96
    %v288 = vpop.permute.xlu0 %287
    %289 = vrot.lane.b32.xlu0 %v180, 96
    %v290 = vpop.permute.xlu0 %289
    %291 = vrot.lane.b32.xlu0 %v183, 96
    %v292 = vpop.permute.xlu0 %291
    %297 = vrot.lane.b32.xlu0 %v174, 88
    %v298 = vpop.permute.xlu0 %297
    %299 = vrot.lane.b32.xlu0 %v177, 88
    %v300 = vpop.permute.xlu0 %299
    %301 = vrot.lane.b32.xlu0 %v180, 88
    %v302 = vpop.permute.xlu0 %301
    %303 = vrot.lane.b32.xlu0 %v183, 88
    %v304 = vpop.permute.xlu0 %303
    %309 = vrot.lane.b32.xlu0 %v174, 80
    %v310 = vpop.permute.xlu0 %309
    %311 = vrot.lane.b32.xlu0 %v177, 80
    %v312 = vpop.permute.xlu0 %311
    %313 = vrot.lane.b32.xlu0 %v180, 80
    %v314 = vpop.permute.xlu0 %313
    %315 = vrot.lane.b32.xlu0 %v183, 80
    %v316 = vpop.permute.xlu0 %315
    %321 = vrot.lane.b32.xlu0 %v174, 72
    %v322 = vpop.permute.xlu0 %321
    %323 = vrot.lane.b32.xlu0 %v177, 72
    %v324 = vpop.permute.xlu0 %323
    %325 = vrot.lane.b32.xlu0 %v180, 72
    %v326 = vpop.permute.xlu0 %325
    %327 = vrot.lane.b32.xlu0 %v183, 72
    %v328 = vpop.permute.xlu0 %327
    %333 = vrot.lane.b32.xlu0 %v145, 64
    %v334 = vpop.permute.xlu0 %333
    %335 = vrot.lane.b32.xlu0 %v148, 64
    %v336 = vpop.permute.xlu0 %335
    %vm337 = vcmask 64512
    %v338 = vsel %vm337, %v145, 0
    %v340 = vsel %vm337, %v148, 0
    %v342 = vsel %vm337, %v334, 0
    %v344 = vsel %vm337, %v336, 0
    %346 = vmatpush.xpose.msra.mxu0 0.0
    %347 = vmatpush.xpose.msra.mxu0 0.0
    %348 = vmatpush.xpose.msra.mxu0 0.0
    %349 = vmatpush.xpose.msra.mxu0 0.0
    %350 = vmatpush.xpose.msra.mxu0 0.0
    %351 = vmatpush.xpose.msra.mxu0 0.0
    %352 = vmatpush.xpose.msra.mxu0 0.0
    %353 = vmatpush.xpose.msra.mxu0 0.0
    %354 = vmatpush.xpose.msra.mxu0 0.0
    %355 = vmatpush.xpose.msra.mxu0 0.0
    %356 = vmatpush.xpose.msra.mxu0 0.0
    %357 = vmatpush.xpose.msra.mxu0 0.0
    %358 = vmatpush.xpose.msra.mxu0 0.0
    %359 = vmatpush.xpose.msra.mxu0 0.0
    %360 = vmatpush.xpose.msra.mxu0 %v344
    %361 = vmatpush.xpose.msra.mxu0 %v342
    %362 = vmatmul.f32.gmra.mxu0 %v338
    %v363 = vpop.f32.mrf.mxu0
    %v364 = vadd.f32 0.0, %v363
    %365 = vmatmul.f32.gmra.mxu0 %v340
    %v366 = vpop.f32.mrf.mxu0
    %v367 = vadd.f32 0.0, %v366
    %368 = vdwg.mxu0
    %369 = vrot.lane.b32.xlu0 %v151, 64
    %v370 = vpop.permute.xlu0 %369
    %371 = vrot.lane.b32.xlu0 %v154, 64
    %v372 = vpop.permute.xlu0 %371
    %v373 = vsel %vm337, %v151, 0
    %v375 = vsel %vm337, %v154, 0
    %v377 = vsel %vm337, %v370, 0
    %v379 = vsel %vm337, %v372, 0
    %381 = vmatpush.xpose.msra.mxu0 0.0
    %382 = vmatpush.xpose.msra.mxu0 0.0
    %383 = vmatpush.xpose.msra.mxu0 0.0
    %384 = vmatpush.xpose.msra.mxu0 0.0
    %385 = vmatpush.xpose.msra.mxu0 0.0
    %386 = vmatpush.xpose.msra.mxu0 0.0
    %387 = vmatpush.xpose.msra.mxu0 0.0
    %388 = vmatpush.xpose.msra.mxu0 0.0
    %389 = vmatpush.xpose.msra.mxu0 0.0
    %390 = vmatpush.xpose.msra.mxu0 0.0
    %391 = vmatpush.xpose.msra.mxu0 0.0
    %392 = vmatpush.xpose.msra.mxu0 0.0
    %393 = vmatpush.xpose.msra.mxu0 0.0
    %394 = vmatpush.xpose.msra.mxu0 0.0
    %395 = vmatpush.xpose.msra.mxu0 %v379
    %396 = vmatpush.xpose.msra.mxu0 %v377
    %397 = vmatmul.f32.gmra.mxu0 %v373
    %v398 = vpop.f32.mrf.mxu0
    %v399 = vadd.f32 0.0, %v398
    %400 = vmatmul.f32.gmra.mxu0 %v375
    %v401 = vpop.f32.mrf.mxu0
    %v402 = vadd.f32 0.0, %v401
    %403 = vdwg.mxu0
    %404 = vrot.lane.b32.xlu0 %v190, 64
    %v405 = vpop.permute.xlu0 %404
    %406 = vrot.lane.b32.xlu0 %v192, 64
    %v407 = vpop.permute.xlu0 %406
    %v408 = vsel %vm337, %v190, 0
    %v410 = vsel %vm337, %v192, 0
    %v412 = vsel %vm337, %v405, 0
    %v414 = vsel %vm337, %v407, 0
    %416 = vmatpush.xpose.msra.mxu0 0.0
    %417 = vmatpush.xpose.msra.mxu0 0.0
    %418 = vmatpush.xpose.msra.mxu0 0.0
    %419 = vmatpush.xpose.msra.mxu0 0.0
    %420 = vmatpush.xpose.msra.mxu0 0.0
    %421 = vmatpush.xpose.msra.mxu0 0.0
    %422 = vmatpush.xpose.msra.mxu0 0.0
    %423 = vmatpush.xpose.msra.mxu0 0.0
    %424 = vmatpush.xpose.msra.mxu0 0.0
    %425 = vmatpush.xpose.msra.mxu0 0.0
    %426 = vmatpush.xpose.msra.mxu0 0.0
    %427 = vmatpush.xpose.msra.mxu0 0.0
    %428 = vmatpush.xpose.msra.mxu0 0.0
    %429 = vmatpush.xpose.msra.mxu0 0.0
    %430 = vmatpush.xpose.msra.mxu0 %v414
    %431 = vmatpush.xpose.msra.mxu0 %v412
    %432 = vmatmul.f32.gmra.mxu0 %v408
    %v433 = vpop.f32.mrf.mxu0
    %v434 = vadd.f32 0.0, %v433
    %435 = vmatmul.f32.gmra.mxu0 %v410
    %v436 = vpop.f32.mrf.mxu0
    %v437 = vadd.f32 0.0, %v436
    %438 = vdwg.mxu0
    %439 = vrot.lane.b32.xlu0 %v194, 64
    %v440 = vpop.permute.xlu0 %439
    %441 = vrot.lane.b32.xlu0 %v196, 64
    %v442 = vpop.permute.xlu0 %441
    %v443 = vsel %vm337, %v194, 0
    %v445 = vsel %vm337, %v196, 0
    %v447 = vsel %vm337, %v440, 0
    %v449 = vsel %vm337, %v442, 0
    %451 = vmatpush.xpose.msra.mxu0 0.0
    %452 = vmatpush.xpose.msra.mxu0 0.0
    %453 = vmatpush.xpose.msra.mxu0 0.0
    %454 = vmatpush.xpose.msra.mxu0 0.0
    %455 = vmatpush.xpose.msra.mxu0 0.0
    %456 = vmatpush.xpose.msra.mxu0 0.0
    %457 = vmatpush.xpose.msra.mxu0 0.0
    %458 = vmatpush.xpose.msra.mxu0 0.0
    %459 = vmatpush.xpose.msra.mxu0 0.0
    %460 = vmatpush.xpose.msra.mxu0 0.0
    %461 = vmatpush.xpose.msra.mxu0 0.0
    %462 = vmatpush.xpose.msra.mxu0 0.0
    %463 = vmatpush.xpose.msra.mxu0 0.0
    %464 = vmatpush.xpose.msra.mxu0 0.0
    %465 = vmatpush.xpose.msra.mxu0 %v449
    %466 = vmatpush.xpose.msra.mxu0 %v447
    %467 = vmatmul.f32.gmra.mxu0 %v443
    %v468 = vpop.f32.mrf.mxu0
    %v469 = vadd.f32 0.0, %v468
    %470 = vmatmul.f32.gmra.mxu0 %v445
    %v471 = vpop.f32.mrf.mxu0
    %v472 = vadd.f32 0.0, %v471
    %473 = vdwg.mxu0
    %474 = vrot.lane.b32.xlu0 %v198, 64
    %v475 = vpop.permute.xlu0 %474
    %476 = vrot.lane.b32.xlu0 %v200, 64
    %v477 = vpop.permute.xlu0 %476
    %v478 = vsel %vm337, %v198, 0
    %v480 = vsel %vm337, %v200, 0
    %v482 = vsel %vm337, %v475, 0
    %v484 = vsel %vm337, %v477, 0
    %486 = vmatpush.xpose.msra.mxu0 0.0
    %487 = vmatpush.xpose.msra.mxu0 0.0
    %488 = vmatpush.xpose.msra.mxu0 0.0
    %489 = vmatpush.xpose.msra.mxu0 0.0
    %490 = vmatpush.xpose.msra.mxu0 0.0
    %491 = vmatpush.xpose.msra.mxu0 0.0
    %492 = vmatpush.xpose.msra.mxu0 0.0
    %493 = vmatpush.xpose.msra.mxu0 0.0
    %494 = vmatpush.xpose.msra.mxu0 0.0
    %495 = vmatpush.xpose.msra.mxu0 0.0
    %496 = vmatpush.xpose.msra.mxu0 0.0
    %497 = vmatpush.xpose.msra.mxu0 0.0
    %498 = vmatpush.xpose.msra.mxu0 0.0
    %499 = vmatpush.xpose.msra.mxu0 0.0
    %500 = vmatpush.xpose.msra.mxu0 %v484
    %501 = vmatpush.xpose.msra.mxu0 %v482
    %502 = vmatmul.f32.gmra.mxu0 %v478
    %v503 = vpop.f32.mrf.mxu0
    %v504 = vadd.f32 0.0, %v503
    %505 = vmatmul.f32.gmra.mxu0 %v480
    %v506 = vpop.f32.mrf.mxu0
    %v507 = vadd.f32 0.0, %v506
    %508 = vdwg.mxu0
    %509 = vrot.lane.b32.xlu0 %v202, 64
    %v510 = vpop.permute.xlu0 %509
    %511 = vrot.lane.b32.xlu0 %v204, 64
    %v512 = vpop.permute.xlu0 %511
    %v513 = vsel %vm337, %v202, 0
    %v515 = vsel %vm337, %v204, 0
    %v517 = vsel %vm337, %v510, 0
    %v519 = vsel %vm337, %v512, 0
    %521 = vmatpush.xpose.msra.mxu0 0.0
    %522 = vmatpush.xpose.msra.mxu0 0.0
    %523 = vmatpush.xpose.msra.mxu0 0.0
    %524 = vmatpush.xpose.msra.mxu0 0.0
    %525 = vmatpush.xpose.msra.mxu0 0.0
    %526 = vmatpush.xpose.msra.mxu0 0.0
    %527 = vmatpush.xpose.msra.mxu0 0.0
    %528 = vmatpush.xpose.msra.mxu0 0.0
    %529 = vmatpush.xpose.msra.mxu0 0.0
    %530 = vmatpush.xpose.msra.mxu0 0.0
    %531 = vmatpush.xpose.msra.mxu0 0.0
    %532 = vmatpush.xpose.msra.mxu0 0.0
    %533 = vmatpush.xpose.msra.mxu0 0.0
    %534 = vmatpush.xpose.msra.mxu0 0.0
    %535 = vmatpush.xpose.msra.mxu0 %v519
    %536 = vmatpush.xpose.msra.mxu0 %v517
    %537 = vmatmul.f32.gmra.mxu0 %v513
    %v538 = vpop.f32.mrf.mxu0
    %v539 = vadd.f32 0.0, %v538
    %540 = vmatmul.f32.gmra.mxu0 %v515
    %v541 = vpop.f32.mrf.mxu0
    %v542 = vadd.f32 0.0, %v541
    %543 = vdwg.mxu0
    %544 = vrot.lane.b32.xlu0 %v206, 64
    %v545 = vpop.permute.xlu0 %544
    %546 = vrot.lane.b32.xlu0 %v208, 64
    %v547 = vpop.permute.xlu0 %546
    %v548 = vsel %vm337, %v206, 0
    %v550 = vsel %vm337, %v208, 0
    %v552 = vsel %vm337, %v545, 0
    %v554 = vsel %vm337, %v547, 0
    %556 = vmatpush.xpose.msra.mxu0 0.0
    %557 = vmatpush.xpose.msra.mxu0 0.0
    %558 = vmatpush.xpose.msra.mxu0 0.0
    %559 = vmatpush.xpose.msra.mxu0 0.0
    %560 = vmatpush.xpose.msra.mxu0 0.0
    %561 = vmatpush.xpose.msra.mxu0 0.0
    %562 = vmatpush.xpose.msra.mxu0 0.0
    %563 = vmatpush.xpose.msra.mxu0 0.0
    %564 = vmatpush.xpose.msra.mxu0 0.0
    %565 = vmatpush.xpose.msra.mxu0 0.0
    %566 = vmatpush.xpose.msra.mxu0 0.0
    %567 = vmatpush.xpose.msra.mxu0 0.0
    %568 = vmatpush.xpose.msra.mxu0 0.0
    %569 = vmatpush.xpose.msra.mxu0 0.0
    %570 = vmatpush.xpose.msra.mxu0 %v554
    %571 = vmatpush.xpose.msra.mxu0 %v552
    %572 = vmatmul.f32.gmra.mxu0 %v548
    %v573 = vpop.f32.mrf.mxu0
    %v574 = vadd.f32 0.0, %v573
    %575 = vmatmul.f32.gmra.mxu0 %v550
    %v576 = vpop.f32.mrf.mxu0
    %v577 = vadd.f32 0.0, %v576
    %578 = vdwg.mxu0
    %579 = vrot.lane.b32.xlu0 %v210, 64
    %v580 = vpop.permute.xlu0 %579
    %581 = vrot.lane.b32.xlu0 %v212, 64
    %v582 = vpop.permute.xlu0 %581
    %v583 = vsel %vm337, %v210, 0
    %v585 = vsel %vm337, %v212, 0
    %v587 = vsel %vm337, %v580, 0
    %v589 = vsel %vm337, %v582, 0
    %591 = vmatpush.xpose.msra.mxu0 0.0
    %592 = vmatpush.xpose.msra.mxu0 0.0
    %593 = vmatpush.xpose.msra.mxu0 0.0
    %594 = vmatpush.xpose.msra.mxu0 0.0
    %595 = vmatpush.xpose.msra.mxu0 0.0
    %596 = vmatpush.xpose.msra.mxu0 0.0
    %597 = vmatpush.xpose.msra.mxu0 0.0
    %598 = vmatpush.xpose.msra.mxu0 0.0
    %599 = vmatpush.xpose.msra.mxu0 0.0
    %600 = vmatpush.xpose.msra.mxu0 0.0
    %601 = vmatpush.xpose.msra.mxu0 0.0
    %602 = vmatpush.xpose.msra.mxu0 0.0
    %603 = vmatpush.xpose.msra.mxu0 0.0
    %604 = vmatpush.xpose.msra.mxu0 0.0
    %605 = vmatpush.xpose.msra.mxu0 %v589
    %606 = vmatpush.xpose.msra.mxu0 %v587
    %607 = vmatmul.f32.gmra.mxu0 %v583
    %v608 = vpop.f32.mrf.mxu0
    %v609 = vadd.f32 0.0, %v608
    %610 = vmatmul.f32.gmra.mxu0 %v585
    %v611 = vpop.f32.mrf.mxu0
    %v612 = vadd.f32 0.0, %v611
    %613 = vdwg.mxu0
    %614 = vrot.lane.b32.xlu0 %v214, 64
    %v615 = vpop.permute.xlu0 %614
    %616 = vrot.lane.b32.xlu0 %v216, 64
    %v617 = vpop.permute.xlu0 %616
    %v618 = vsel %vm337, %v214, 0
    %v620 = vsel %vm337, %v216, 0
    %v622 = vsel %vm337, %v615, 0
    %v624 = vsel %vm337, %v617, 0
    %626 = vmatpush.xpose.msra.mxu0 0.0
    %627 = vmatpush.xpose.msra.mxu0 0.0
    %628 = vmatpush.xpose.msra.mxu0 0.0
    %629 = vmatpush.xpose.msra.mxu0 0.0
    %630 = vmatpush.xpose.msra.mxu0 0.0
    %631 = vmatpush.xpose.msra.mxu0 0.0
    %632 = vmatpush.xpose.msra.mxu0 0.0
    %633 = vmatpush.xpose.msra.mxu0 0.0
    %634 = vmatpush.xpose.msra.mxu0 0.0
    %635 = vmatpush.xpose.msra.mxu0 0.0
    %636 = vmatpush.xpose.msra.mxu0 0.0
    %637 = vmatpush.xpose.msra.mxu0 0.0
    %638 = vmatpush.xpose.msra.mxu0 0.0
    %639 = vmatpush.xpose.msra.mxu0 0.0
    %640 = vmatpush.xpose.msra.mxu0 %v624
    %641 = vmatpush.xpose.msra.mxu0 %v622
    %642 = vmatmul.f32.gmra.mxu0 %v618
    %v643 = vpop.f32.mrf.mxu0
    %v644 = vadd.f32 0.0, %v643
    %645 = vmatmul.f32.gmra.mxu0 %v620
    %v646 = vpop.f32.mrf.mxu0
    %v647 = vadd.f32 0.0, %v646
    %648 = vdwg.mxu0
    %649 = vrot.lane.b32.xlu0 %v218, 64
    %v650 = vpop.permute.xlu0 %649
    %651 = vrot.lane.b32.xlu0 %v220, 64
    %v652 = vpop.permute.xlu0 %651
    %v653 = vsel %vm337, %v218, 0
    %v655 = vsel %vm337, %v220, 0
    %v657 = vsel %vm337, %v650, 0
    %v659 = vsel %vm337, %v652, 0
    %661 = vmatpush.xpose.msra.mxu0 0.0
    %662 = vmatpush.xpose.msra.mxu0 0.0
    %663 = vmatpush.xpose.msra.mxu0 0.0
    %664 = vmatpush.xpose.msra.mxu0 0.0
    %665 = vmatpush.xpose.msra.mxu0 0.0
    %666 = vmatpush.xpose.msra.mxu0 0.0
    %667 = vmatpush.xpose.msra.mxu0 0.0
    %668 = vmatpush.xpose.msra.mxu0 0.0
    %669 = vmatpush.xpose.msra.mxu0 0.0
    %670 = vmatpush.xpose.msra.mxu0 0.0
    %671 = vmatpush.xpose.msra.mxu0 0.0
    %672 = vmatpush.xpose.msra.mxu0 0.0
    %673 = vmatpush.xpose.msra.mxu0 0.0
    %674 = vmatpush.xpose.msra.mxu0 0.0
    %675 = vmatpush.xpose.msra.mxu0 %v659
    %676 = vmatpush.xpose.msra.mxu0 %v657
    %677 = vmatmul.f32.gmra.mxu0 %v653
    %v678 = vpop.f32.mrf.mxu0
    %v679 = vadd.f32 0.0, %v678
    %680 = vmatmul.f32.gmra.mxu0 %v655
    %v681 = vpop.f32.mrf.mxu0
    %v682 = vadd.f32 0.0, %v681
    %683 = vdwg.mxu0
    %684 = vrot.lane.b32.xlu0 %v222, 64
    %v685 = vpop.permute.xlu0 %684
    %686 = vrot.lane.b32.xlu0 %v224, 64
    %v687 = vpop.permute.xlu0 %686
    %v688 = vsel %vm337, %v222, 0
    %v690 = vsel %vm337, %v224, 0
    %v692 = vsel %vm337, %v685, 0
    %v694 = vsel %vm337, %v687, 0
    %696 = vmatpush.xpose.msra.mxu0 0.0
    %697 = vmatpush.xpose.msra.mxu0 0.0
    %698 = vmatpush.xpose.msra.mxu0 0.0
    %699 = vmatpush.xpose.msra.mxu0 0.0
    %700 = vmatpush.xpose.msra.mxu0 0.0
    %701 = vmatpush.xpose.msra.mxu0 0.0
    %702 = vmatpush.xpose.msra.mxu0 0.0
    %703 = vmatpush.xpose.msra.mxu0 0.0
    %704 = vmatpush.xpose.msra.mxu0 0.0
    %705 = vmatpush.xpose.msra.mxu0 0.0
    %706 = vmatpush.xpose.msra.mxu0 0.0
    %707 = vmatpush.xpose.msra.mxu0 0.0
    %708 = vmatpush.xpose.msra.mxu0 0.0
    %709 = vmatpush.xpose.msra.mxu0 0.0
    %710 = vmatpush.xpose.msra.mxu0 %v694
    %711 = vmatpush.xpose.msra.mxu0 %v692
    %712 = vmatmul.f32.gmra.mxu0 %v688
    %v713 = vpop.f32.mrf.mxu0
    %v714 = vadd.f32 0.0, %v713
    %715 = vmatmul.f32.gmra.mxu0 %v690
    %v716 = vpop.f32.mrf.mxu0
    %v717 = vadd.f32 0.0, %v716
    %718 = vdwg.mxu0
    %719 = vrot.lane.b32.xlu0 %v226, 64
    %v720 = vpop.permute.xlu0 %719
    %721 = vrot.lane.b32.xlu0 %v228, 64
    %v722 = vpop.permute.xlu0 %721
    %v723 = vsel %vm337, %v226, 0
    %v725 = vsel %vm337, %v228, 0
    %v727 = vsel %vm337, %v720, 0
    %v729 = vsel %vm337, %v722, 0
    %731 = vmatpush.xpose.msra.mxu0 0.0
    %732 = vmatpush.xpose.msra.mxu0 0.0
    %733 = vmatpush.xpose.msra.mxu0 0.0
    %734 = vmatpush.xpose.msra.mxu0 0.0
    %735 = vmatpush.xpose.msra.mxu0 0.0
    %736 = vmatpush.xpose.msra.mxu0 0.0
    %737 = vmatpush.xpose.msra.mxu0 0.0
    %738 = vmatpush.xpose.msra.mxu0 0.0
    %739 = vmatpush.xpose.msra.mxu0 0.0
    %740 = vmatpush.xpose.msra.mxu0 0.0
    %741 = vmatpush.xpose.msra.mxu0 0.0
    %742 = vmatpush.xpose.msra.mxu0 0.0
    %743 = vmatpush.xpose.msra.mxu0 0.0
    %744 = vmatpush.xpose.msra.mxu0 0.0
    %745 = vmatpush.xpose.msra.mxu0 %v729
    %746 = vmatpush.xpose.msra.mxu0 %v727
    %747 = vmatmul.f32.gmra.mxu0 %v723
    %v748 = vpop.f32.mrf.mxu0
    %v749 = vadd.f32 0.0, %v748
    %750 = vmatmul.f32.gmra.mxu0 %v725
    %v751 = vpop.f32.mrf.mxu0
    %v752 = vadd.f32 0.0, %v751
    %753 = vdwg.mxu0
    %754 = vrot.lane.b32.xlu0 %v230, 64
    %v755 = vpop.permute.xlu0 %754
    %756 = vrot.lane.b32.xlu0 %v232, 64
    %v757 = vpop.permute.xlu0 %756
    %v758 = vsel %vm337, %v230, 0
    %v760 = vsel %vm337, %v232, 0
    %v762 = vsel %vm337, %v755, 0
    %v764 = vsel %vm337, %v757, 0
    %766 = vmatpush.xpose.msra.mxu0 0.0
    %767 = vmatpush.xpose.msra.mxu0 0.0
    %768 = vmatpush.xpose.msra.mxu0 0.0
    %769 = vmatpush.xpose.msra.mxu0 0.0
    %770 = vmatpush.xpose.msra.mxu0 0.0
    %771 = vmatpush.xpose.msra.mxu0 0.0
    %772 = vmatpush.xpose.msra.mxu0 0.0
    %773 = vmatpush.xpose.msra.mxu0 0.0
    %774 = vmatpush.xpose.msra.mxu0 0.0
    %775 = vmatpush.xpose.msra.mxu0 0.0
    %776 = vmatpush.xpose.msra.mxu0 0.0
    %777 = vmatpush.xpose.msra.mxu0 0.0
    %778 = vmatpush.xpose.msra.mxu0 0.0
    %779 = vmatpush.xpose.msra.mxu0 0.0
    %780 = vmatpush.xpose.msra.mxu0 %v764
    %781 = vmatpush.xpose.msra.mxu0 %v762
    %782 = vmatmul.f32.gmra.mxu0 %v758
    %v783 = vpop.f32.mrf.mxu0
    %v784 = vadd.f32 0.0, %v783
    %785 = vmatmul.f32.gmra.mxu0 %v760
    %v786 = vpop.f32.mrf.mxu0
    %v787 = vadd.f32 0.0, %v786
    %788 = vdwg.mxu0
    %789 = vrot.lane.b32.xlu0 %v234, 64
    %v790 = vpop.permute.xlu0 %789
    %791 = vrot.lane.b32.xlu0 %v236, 64
    %v792 = vpop.permute.xlu0 %791
    %v793 = vsel %vm337, %v234, 0
    %v795 = vsel %vm337, %v236, 0
    %v797 = vsel %vm337, %v790, 0
    %v799 = vsel %vm337, %v792, 0
    %801 = vmatpush.xpose.msra.mxu0 0.0
    %802 = vmatpush.xpose.msra.mxu0 0.0
    %803 = vmatpush.xpose.msra.mxu0 0.0
    %804 = vmatpush.xpose.msra.mxu0 0.0
    %805 = vmatpush.xpose.msra.mxu0 0.0
    %806 = vmatpush.xpose.msra.mxu0 0.0
    %807 = vmatpush.xpose.msra.mxu0 0.0
    %808 = vmatpush.xpose.msra.mxu0 0.0
    %809 = vmatpush.xpose.msra.mxu0 0.0
    %810 = vmatpush.xpose.msra.mxu0 0.0
    %811 = vmatpush.xpose.msra.mxu0 0.0
    %812 = vmatpush.xpose.msra.mxu0 0.0
    %813 = vmatpush.xpose.msra.mxu0 0.0
    %814 = vmatpush.xpose.msra.mxu0 0.0
    %815 = vmatpush.xpose.msra.mxu0 %v799
    %816 = vmatpush.xpose.msra.mxu0 %v797
    %817 = vmatmul.f32.gmra.mxu0 %v793
    %v818 = vpop.f32.mrf.mxu0
    %v819 = vadd.f32 0.0, %v818
    %820 = vmatmul.f32.gmra.mxu0 %v795
    %v821 = vpop.f32.mrf.mxu0
    %v822 = vadd.f32 0.0, %v821
    %823 = vdwg.mxu0
    %824 = vrot.lane.b32.xlu0 %v238, 64
    %v825 = vpop.permute.xlu0 %824
    %826 = vrot.lane.b32.xlu0 %v240, 64
    %v827 = vpop.permute.xlu0 %826
    %v828 = vsel %vm337, %v238, 0
    %v830 = vsel %vm337, %v240, 0
    %v832 = vsel %vm337, %v825, 0
    %v834 = vsel %vm337, %v827, 0
    %836 = vmatpush.xpose.msra.mxu0 0.0
    %837 = vmatpush.xpose.msra.mxu0 0.0
    %838 = vmatpush.xpose.msra.mxu0 0.0
    %839 = vmatpush.xpose.msra.mxu0 0.0
    %840 = vmatpush.xpose.msra.mxu0 0.0
    %841 = vmatpush.xpose.msra.mxu0 0.0
    %842 = vmatpush.xpose.msra.mxu0 0.0
    %843 = vmatpush.xpose.msra.mxu0 0.0
    %844 = vmatpush.xpose.msra.mxu0 0.0
    %845 = vmatpush.xpose.msra.mxu0 0.0
    %846 = vmatpush.xpose.msra.mxu0 0.0
    %847 = vmatpush.xpose.msra.mxu0 0.0
    %848 = vmatpush.xpose.msra.mxu0 0.0
    %849 = vmatpush.xpose.msra.mxu0 0.0
    %850 = vmatpush.xpose.msra.mxu0 %v834
    %851 = vmatpush.xpose.msra.mxu0 %v832
    %852 = vmatmul.f32.gmra.mxu0 %v828
    %v853 = vpop.f32.mrf.mxu0
    %v854 = vadd.f32 0.0, %v853
    %855 = vmatmul.f32.gmra.mxu0 %v830
    %v856 = vpop.f32.mrf.mxu0
    %v857 = vadd.f32 0.0, %v856
    %858 = vdwg.mxu0
    %859 = vrot.lane.b32.xlu0 %v242, 64
    %v860 = vpop.permute.xlu0 %859
    %861 = vrot.lane.b32.xlu0 %v244, 64
    %v862 = vpop.permute.xlu0 %861
    %v863 = vsel %vm337, %v242, 0
    %v865 = vsel %vm337, %v244, 0
    %v867 = vsel %vm337, %v860, 0
    %v869 = vsel %vm337, %v862, 0
    %871 = vmatpush.xpose.msra.mxu0 0.0
    %872 = vmatpush.xpose.msra.mxu0 0.0
    %873 = vmatpush.xpose.msra.mxu0 0.0
    %874 = vmatpush.xpose.msra.mxu0 0.0
    %875 = vmatpush.xpose.msra.mxu0 0.0
    %876 = vmatpush.xpose.msra.mxu0 0.0
    %877 = vmatpush.xpose.msra.mxu0 0.0
    %878 = vmatpush.xpose.msra.mxu0 0.0
    %879 = vmatpush.xpose.msra.mxu0 0.0
    %880 = vmatpush.xpose.msra.mxu0 0.0
    %881 = vmatpush.xpose.msra.mxu0 0.0
    %882 = vmatpush.xpose.msra.mxu0 0.0
    %883 = vmatpush.xpose.msra.mxu0 0.0
    %884 = vmatpush.xpose.msra.mxu0 0.0
    %885 = vmatpush.xpose.msra.mxu0 %v869
    %886 = vmatpush.xpose.msra.mxu0 %v867
    %887 = vmatmul.f32.gmra.mxu0 %v863
    %v888 = vpop.f32.mrf.mxu0
    %v889 = vadd.f32 0.0, %v888
    %890 = vmatmul.f32.gmra.mxu0 %v865
    %v891 = vpop.f32.mrf.mxu0
    %v892 = vadd.f32 0.0, %v891
    %893 = vdwg.mxu0
    %v894 = vmul.f32 %v364, 0.35355338
    %v895 = vmul.f32 %v367, 0.35355338
    %v896 = vmul.f32 %v399, 0.35355338
    %v897 = vmul.f32 %v402, 0.35355338
    %v898 = vmul.f32 %v434, 0.35355338
    %v899 = vmul.f32 %v437, 0.35355338
    %v900 = vmul.f32 %v469, 0.35355338
    %v901 = vmul.f32 %v472, 0.35355338
    %v902 = vmul.f32 %v504, 0.35355338
    %v903 = vmul.f32 %v507, 0.35355338
    %v904 = vmul.f32 %v539, 0.35355338
    %v905 = vmul.f32 %v542, 0.35355338
    %v906 = vmul.f32 %v574, 0.35355338
    %v907 = vmul.f32 %v577, 0.35355338
    %v908 = vmul.f32 %v609, 0.35355338
    %v909 = vmul.f32 %v612, 0.35355338
    %v910 = vmul.f32 %v644, 0.35355338
    %v911 = vmul.f32 %v647, 0.35355338
    %v912 = vmul.f32 %v679, 0.35355338
    %v913 = vmul.f32 %v682, 0.35355338
    %v914 = vmul.f32 %v714, 0.35355338
    %v915 = vmul.f32 %v717, 0.35355338
    %v916 = vmul.f32 %v749, 0.35355338
    %v917 = vmul.f32 %v752, 0.35355338
    %v918 = vmul.f32 %v784, 0.35355338
    %v919 = vmul.f32 %v787, 0.35355338
    %v920 = vmul.f32 %v819, 0.35355338
    %v921 = vmul.f32 %v822, 0.35355338
    %v922 = vmul.f32 %v854, 0.35355338
    %v923 = vmul.f32 %v857, 0.35355338
    %v924 = vmul.f32 %v889, 0.35355338
    %v925 = vmul.f32 %v892, 0.35355338
    %vm926 = vcmask 130048
    %v927 = vsel %vm926, %v894, -inf
    %928 = vmax.xlane.f32.xlu0 %v927
    %v929 = vpop.xlane.xlu0 %928
    %v930 = vsel %vm926, %v895, -inf
    %931 = vmax.xlane.f32.xlu0 %v930
    %v932 = vpop.xlane.xlu0 %931
    %v933 = vsel %vm926, %v896, -inf
    %934 = vmax.xlane.f32.xlu0 %v933
    %v935 = vpop.xlane.xlu0 %934
    %v936 = vsel %vm926, %v897, -inf
    %937 = vmax.xlane.f32.xlu0 %v936
    %v938 = vpop.xlane.xlu0 %937
    %v939 = vsel %vm926, %v898, -inf
    %940 = vmax.xlane.f32.xlu0 %v939
    %v941 = vpop.xlane.xlu0 %940
    %v942 = vsel %vm926, %v899, -inf
    %943 = vmax.xlane.f32.xlu0 %v942
    %v944 = vpop.xlane.xlu0 %943
    %v945 = vsel %vm926, %v900, -inf
    %946 = vmax.xlane.f32.xlu0 %v945
    %v947 = vpop.xlane.xlu0 %946
    %v948 = vsel %vm926, %v901, -inf
    %949 = vmax.xlane.f32.xlu0 %v948
    %v950 = vpop.xlane.xlu0 %949
    %v951 = vsel %vm926, %v902, -inf
    %952 = vmax.xlane.f32.xlu0 %v951
    %v953 = vpop.xlane.xlu0 %952
    %v954 = vsel %vm926, %v903, -inf
    %955 = vmax.xlane.f32.xlu0 %v954
    %v956 = vpop.xlane.xlu0 %955
    %v957 = vsel %vm926, %v904, -inf
    %958 = vmax.xlane.f32.xlu0 %v957
    %v959 = vpop.xlane.xlu0 %958
    %v960 = vsel %vm926, %v905, -inf
    %961 = vmax.xlane.f32.xlu0 %v960
    %v962 = vpop.xlane.xlu0 %961
    %v963 = vsel %vm926, %v906, -inf
    %964 = vmax.xlane.f32.xlu0 %v963
    %v965 = vpop.xlane.xlu0 %964
    %v966 = vsel %vm926, %v907, -inf
    %967 = vmax.xlane.f32.xlu0 %v966
    %v968 = vpop.xlane.xlu0 %967
    %v969 = vsel %vm926, %v908, -inf
    %970 = vmax.xlane.f32.xlu0 %v969
    %v971 = vpop.xlane.xlu0 %970
    %v972 = vsel %vm926, %v909, -inf
    %973 = vmax.xlane.f32.xlu0 %v972
    %v974 = vpop.xlane.xlu0 %973
    %v975 = vsel %vm926, %v910, -inf
    %976 = vmax.xlane.f32.xlu0 %v975
    %v977 = vpop.xlane.xlu0 %976
    %v978 = vsel %vm926, %v911, -inf
    %979 = vmax.xlane.f32.xlu0 %v978
    %v980 = vpop.xlane.xlu0 %979
    %v981 = vsel %vm926, %v912, -inf
    %982 = vmax.xlane.f32.xlu0 %v981
    %v983 = vpop.xlane.xlu0 %982
    %v984 = vsel %vm926, %v913, -inf
    %985 = vmax.xlane.f32.xlu0 %v984
    %v986 = vpop.xlane.xlu0 %985
    %v987 = vsel %vm926, %v914, -inf
    %988 = vmax.xlane.f32.xlu0 %v987
    %v989 = vpop.xlane.xlu0 %988
    %v990 = vsel %vm926, %v915, -inf
    %991 = vmax.xlane.f32.xlu0 %v990
    %v992 = vpop.xlane.xlu0 %991
    %v993 = vsel %vm926, %v916, -inf
    %994 = vmax.xlane.f32.xlu0 %v993
    %v995 = vpop.xlane.xlu0 %994
    %v996 = vsel %vm926, %v917, -inf
    %997 = vmax.xlane.f32.xlu0 %v996
    %v998 = vpop.xlane.xlu0 %997
    %v999 = vsel %vm926, %v918, -inf
    %1000 = vmax.xlane.f32.xlu0 %v999
    %v1001 = vpop.xlane.xlu0 %1000
    %v1002 = vsel %vm926, %v919, -inf
    %1003 = vmax.xlane.f32.xlu0 %v1002
    %v1004 = vpop.xlane.xlu0 %1003
    %v1005 = vsel %vm926, %v920, -inf
    %1006 = vmax.xlane.f32.xlu0 %v1005
    %v1007 = vpop.xlane.xlu0 %1006
    %v1008 = vsel %vm926, %v921, -inf
    %1009 = vmax.xlane.f32.xlu0 %v1008
    %v1010 = vpop.xlane.xlu0 %1009
    %v1011 = vsel %vm926, %v922, -inf
    %1012 = vmax.xlane.f32.xlu0 %v1011
    %v1013 = vpop.xlane.xlu0 %1012
    %v1014 = vsel %vm926, %v923, -inf
    %1015 = vmax.xlane.f32.xlu0 %v1014
    %v1016 = vpop.xlane.xlu0 %1015
    %v1017 = vsel %vm926, %v924, -inf
    %1018 = vmax.xlane.f32.xlu0 %v1017
    %v1019 = vpop.xlane.xlu0 %1018
    %v1020 = vsel %vm926, %v925, -inf
    %1021 = vmax.xlane.f32.xlu0 %v1020
    %v1022 = vpop.xlane.xlu0 %1021
    %v1023 = vsub.f32 %v894, %v929
    %v1024 = vsub.f32 %v895, %v932
    %v1025 = vsub.f32 %v896, %v935
    %v1026 = vsub.f32 %v897, %v938
    %v1027 = vsub.f32 %v898, %v941
    %v1028 = vsub.f32 %v899, %v944
    %v1029 = vsub.f32 %v900, %v947
    %v1030 = vsub.f32 %v901, %v950
    %v1031 = vsub.f32 %v902, %v953
    %v1032 = vsub.f32 %v903, %v956
    %v1033 = vsub.f32 %v904, %v959
    %v1034 = vsub.f32 %v905, %v962
    %v1035 = vsub.f32 %v906, %v965
    %v1036 = vsub.f32 %v907, %v968
    %v1037 = vsub.f32 %v908, %v971
    %v1038 = vsub.f32 %v909, %v974
    %v1039 = vsub.f32 %v910, %v977
    %v1040 = vsub.f32 %v911, %v980
    %v1041 = vsub.f32 %v912, %v983
    %v1042 = vsub.f32 %v913, %v986
    %v1043 = vsub.f32 %v914, %v989
    %v1044 = vsub.f32 %v915, %v992
    %v1045 = vsub.f32 %v916, %v995
    %v1046 = vsub.f32 %v917, %v998
    %v1047 = vsub.f32 %v918, %v1001
    %v1048 = vsub.f32 %v919, %v1004
    %v1049 = vsub.f32 %v920, %v1007
    %v1050 = vsub.f32 %v921, %v1010
    %v1051 = vsub.f32 %v922, %v1013
    %v1052 = vsub.f32 %v923, %v1016
    %v1053 = vsub.f32 %v924, %v1019
    %v1054 = vsub.f32 %v925, %v1022
    %v1055 = vmul.f32 %v1023, 1.442695
    %v1056 = vpow.pop %v1055
    %v1057 = vmul.f32 %v1024, 1.442695
    %v1058 = vpow.pop %v1057
    %v1059 = vmul.f32 %v1025, 1.442695
    %v1060 = vpow.pop %v1059
    %v1061 = vmul.f32 %v1026, 1.442695
    %v1062 = vpow.pop %v1061
    %v1063 = vmul.f32 %v1027, 1.442695
    %v1064 = vpow.pop %v1063
    %v1065 = vmul.f32 %v1028, 1.442695
    %v1066 = vpow.pop %v1065
    %v1067 = vmul.f32 %v1029, 1.442695
    %v1068 = vpow.pop %v1067
    %v1069 = vmul.f32 %v1030, 1.442695
    %v1070 = vpow.pop %v1069
    %v1071 = vmul.f32 %v1031, 1.442695
    %v1072 = vpow.pop %v1071
    %v1073 = vmul.f32 %v1032, 1.442695
    %v1074 = vpow.pop %v1073
    %v1075 = vmul.f32 %v1033, 1.442695
    %v1076 = vpow.pop %v1075
    %v1077 = vmul.f32 %v1034, 1.442695
    %v1078 = vpow.pop %v1077
    %v1079 = vmul.f32 %v1035, 1.442695
    %v1080 = vpow.pop %v1079
    %v1081 = vmul.f32 %v1036, 1.442695
    %v1082 = vpow.pop %v1081
    %v1083 = vmul.f32 %v1037, 1.442695
    %v1084 = vpow.pop %v1083
    %v1085 = vmul.f32 %v1038, 1.442695
    %v1086 = vpow.pop %v1085
    %v1087 = vmul.f32 %v1039, 1.442695
    %v1088 = vpow.pop %v1087
    %v1089 = vmul.f32 %v1040, 1.442695
    %v1090 = vpow.pop %v1089
    %v1091 = vmul.f32 %v1041, 1.442695
    %v1092 = vpow.pop %v1091
    %v1093 = vmul.f32 %v1042, 1.442695
    %v1094 = vpow.pop %v1093
    %v1095 = vmul.f32 %v1043, 1.442695
    %v1096 = vpow.pop %v1095
    %v1097 = vmul.f32 %v1044, 1.442695
    %v1098 = vpow.pop %v1097
    %v1099 = vmul.f32 %v1045, 1.442695
    %v1100 = vpow.pop %v1099
    %v1101 = vmul.f32 %v1046, 1.442695
    %v1102 = vpow.pop %v1101
    %v1103 = vmul.f32 %v1047, 1.442695
    %v1104 = vpow.pop %v1103
    %v1105 = vmul.f32 %v1048, 1.442695
    %v1106 = vpow.pop %v1105
    %v1107 = vmul.f32 %v1049, 1.442695
    %v1108 = vpow.pop %v1107
    %v1109 = vmul.f32 %v1050, 1.442695
    %v1110 = vpow.pop %v1109
    %v1111 = vmul.f32 %v1051, 1.442695
    %v1112 = vpow.pop %v1111
    %v1113 = vmul.f32 %v1052, 1.442695
    %v1114 = vpow.pop %v1113
    %v1115 = vmul.f32 %v1053, 1.442695
    %v1116 = vpow.pop %v1115
    %v1117 = vmul.f32 %v1054, 1.442695
    %v1118 = vpow.pop %v1117
    %v1119 = vsel %vm926, %v1056, 0.0
    %1120 = vadd.xlane.f32.xlu0 %v1119
    %v1121 = vpop.xlane.xlu0 %1120
    %v1122 = vsel %vm926, %v1058, 0.0
    %1123 = vadd.xlane.f32.xlu0 %v1122
    %v1124 = vpop.xlane.xlu0 %1123
    %v1125 = vsel %vm926, %v1060, 0.0
    %1126 = vadd.xlane.f32.xlu0 %v1125
    %v1127 = vpop.xlane.xlu0 %1126
    %v1128 = vsel %vm926, %v1062, 0.0
    %1129 = vadd.xlane.f32.xlu0 %v1128
    %v1130 = vpop.xlane.xlu0 %1129
    %v1131 = vsel %vm926, %v1064, 0.0
    %1132 = vadd.xlane.f32.xlu0 %v1131
    %v1133 = vpop.xlane.xlu0 %1132
    %v1134 = vsel %vm926, %v1066, 0.0
    %1135 = vadd.xlane.f32.xlu0 %v1134
    %v1136 = vpop.xlane.xlu0 %1135
    %v1137 = vsel %vm926, %v1068, 0.0
    %1138 = vadd.xlane.f32.xlu0 %v1137
    %v1139 = vpop.xlane.xlu0 %1138
    %v1140 = vsel %vm926, %v1070, 0.0
    %1141 = vadd.xlane.f32.xlu0 %v1140
    %v1142 = vpop.xlane.xlu0 %1141
    %v1143 = vsel %vm926, %v1072, 0.0
    %1144 = vadd.xlane.f32.xlu0 %v1143
    %v1145 = vpop.xlane.xlu0 %1144
    %v1146 = vsel %vm926, %v1074, 0.0
    %1147 = vadd.xlane.f32.xlu0 %v1146
    %v1148 = vpop.xlane.xlu0 %1147
    %v1149 = vsel %vm926, %v1076, 0.0
    %1150 = vadd.xlane.f32.xlu0 %v1149
    %v1151 = vpop.xlane.xlu0 %1150
    %v1152 = vsel %vm926, %v1078, 0.0
    %1153 = vadd.xlane.f32.xlu0 %v1152
    %v1154 = vpop.xlane.xlu0 %1153
    %v1155 = vsel %vm926, %v1080, 0.0
    %1156 = vadd.xlane.f32.xlu0 %v1155
    %v1157 = vpop.xlane.xlu0 %1156
    %v1158 = vsel %vm926, %v1082, 0.0
    %1159 = vadd.xlane.f32.xlu0 %v1158
    %v1160 = vpop.xlane.xlu0 %1159
    %v1161 = vsel %vm926, %v1084, 0.0
    %1162 = vadd.xlane.f32.xlu0 %v1161
    %v1163 = vpop.xlane.xlu0 %1162
    %v1164 = vsel %vm926, %v1086, 0.0
    %1165 = vadd.xlane.f32.xlu0 %v1164
    %v1166 = vpop.xlane.xlu0 %1165
    %v1167 = vsel %vm926, %v1088, 0.0
    %1168 = vadd.xlane.f32.xlu0 %v1167
    %v1169 = vpop.xlane.xlu0 %1168
    %v1170 = vsel %vm926, %v1090, 0.0
    %1171 = vadd.xlane.f32.xlu0 %v1170
    %v1172 = vpop.xlane.xlu0 %1171
    %v1173 = vsel %vm926, %v1092, 0.0
    %1174 = vadd.xlane.f32.xlu0 %v1173
    %v1175 = vpop.xlane.xlu0 %1174
    %v1176 = vsel %vm926, %v1094, 0.0
    %1177 = vadd.xlane.f32.xlu0 %v1176
    %v1178 = vpop.xlane.xlu0 %1177
    %v1179 = vsel %vm926, %v1096, 0.0
    %1180 = vadd.xlane.f32.xlu0 %v1179
    %v1181 = vpop.xlane.xlu0 %1180
    %v1182 = vsel %vm926, %v1098, 0.0
    %1183 = vadd.xlane.f32.xlu0 %v1182
    %v1184 = vpop.xlane.xlu0 %1183
    %v1185 = vsel %vm926, %v1100, 0.0
    %1186 = vadd.xlane.f32.xlu0 %v1185
    %v1187 = vpop.xlane.xlu0 %1186
    %v1188 = vsel %vm926, %v1102, 0.0
    %1189 = vadd.xlane.f32.xlu0 %v1188
    %v1190 = vpop.xlane.xlu0 %1189
    %v1191 = vsel %vm926, %v1104, 0.0
    %1192 = vadd.xlane.f32.xlu0 %v1191
    %v1193 = vpop.xlane.xlu0 %1192
    %v1194 = vsel %vm926, %v1106, 0.0
    %1195 = vadd.xlane.f32.xlu0 %v1194
    %v1196 = vpop.xlane.xlu0 %1195
    %v1197 = vsel %vm926, %v1108, 0.0
    %1198 = vadd.xlane.f32.xlu0 %v1197
    %v1199 = vpop.xlane.xlu0 %1198
    %v1200 = vsel %vm926, %v1110, 0.0
    %1201 = vadd.xlane.f32.xlu0 %v1200
    %v1202 = vpop.xlane.xlu0 %1201
    %v1203 = vsel %vm926, %v1112, 0.0
    %1204 = vadd.xlane.f32.xlu0 %v1203
    %v1205 = vpop.xlane.xlu0 %1204
    %v1206 = vsel %vm926, %v1114, 0.0
    %1207 = vadd.xlane.f32.xlu0 %v1206
    %v1208 = vpop.xlane.xlu0 %1207
    %v1209 = vsel %vm926, %v1116, 0.0
    %1210 = vadd.xlane.f32.xlu0 %v1209
    %v1211 = vpop.xlane.xlu0 %1210
    %v1212 = vsel %vm926, %v1118, 0.0
    %1213 = vadd.xlane.f32.xlu0 %v1212
    %v1214 = vpop.xlane.xlu0 %1213
    %v1215 = vrcp.pop %v1121
    %v1216 = vrcp.pop %v1124
    %v1217 = vrcp.pop %v1127
    %v1218 = vrcp.pop %v1130
    %v1219 = vrcp.pop %v1133
    %v1220 = vrcp.pop %v1136
    %v1221 = vrcp.pop %v1139
    %v1222 = vrcp.pop %v1142
    %v1223 = vrcp.pop %v1145
    %v1224 = vrcp.pop %v1148
    %v1225 = vrcp.pop %v1151
    %v1226 = vrcp.pop %v1154
    %v1227 = vrcp.pop %v1157
    %v1228 = vrcp.pop %v1160
    %v1229 = vrcp.pop %v1163
    %v1230 = vrcp.pop %v1166
    %v1231 = vrcp.pop %v1169
    %v1232 = vrcp.pop %v1172
    %v1233 = vrcp.pop %v1175
    %v1234 = vrcp.pop %v1178
    %v1235 = vrcp.pop %v1181
    %v1236 = vrcp.pop %v1184
    %v1237 = vrcp.pop %v1187
    %v1238 = vrcp.pop %v1190
    %v1239 = vrcp.pop %v1193
    %v1240 = vrcp.pop %v1196
    %v1241 = vrcp.pop %v1199
    %v1242 = vrcp.pop %v1202
    %v1243 = vrcp.pop %v1205
    %v1244 = vrcp.pop %v1208
    %v1245 = vrcp.pop %v1211
    %v1246 = vrcp.pop %v1214
    %v1247 = vmul.f32 %v1056, %v1215
    %v1248 = vmul.f32 %v1058, %v1216
    %v1249 = vmul.f32 %v1060, %v1217
    %v1250 = vmul.f32 %v1062, %v1218
    %v1251 = vmul.f32 %v1064, %v1219
    %v1252 = vmul.f32 %v1066, %v1220
    %v1253 = vmul.f32 %v1068, %v1221
    %v1254 = vmul.f32 %v1070, %v1222
    %v1255 = vmul.f32 %v1072, %v1223
    %v1256 = vmul.f32 %v1074, %v1224
    %v1257 = vmul.f32 %v1076, %v1225
    %v1258 = vmul.f32 %v1078, %v1226
    %v1259 = vmul.f32 %v1080, %v1227
    %v1260 = vmul.f32 %v1082, %v1228
    %v1261 = vmul.f32 %v1084, %v1229
    %v1262 = vmul.f32 %v1086, %v1230
    %v1263 = vmul.f32 %v1088, %v1231
    %v1264 = vmul.f32 %v1090, %v1232
    %v1265 = vmul.f32 %v1092, %v1233
    %v1266 = vmul.f32 %v1094, %v1234
    %v1267 = vmul.f32 %v1096, %v1235
    %v1268 = vmul.f32 %v1098, %v1236
    %v1269 = vmul.f32 %v1100, %v1237
    %v1270 = vmul.f32 %v1102, %v1238
    %v1271 = vmul.f32 %v1104, %v1239
    %v1272 = vmul.f32 %v1106, %v1240
    %v1273 = vmul.f32 %v1108, %v1241
    %v1274 = vmul.f32 %v1110, %v1242
    %v1275 = vmul.f32 %v1112, %v1243
    %v1276 = vmul.f32 %v1114, %v1244
    %v1277 = vmul.f32 %v1116, %v1245
    %v1278 = vmul.f32 %v1118, %v1246
    %v1280 = vsel %vm926, %v1247, 0
    %v1283 = vsel %vm926, %v1248, 0
    %1285 = vmatpush.msra.mxu0 0.0
    %1286 = vmatpush.msra.mxu0 0.0
    %1287 = vmatpush.msra.mxu0 0.0
    %1288 = vmatpush.msra.mxu0 0.0
    %1289 = vmatpush.msra.mxu0 0.0
    %1290 = vmatpush.msra.mxu0 0.0
    %1291 = vmatpush.msra.mxu0 0.0
    %1292 = vmatpush.msra.mxu0 0.0
    %1293 = vmatpush.msra.mxu0 0.0
    %1294 = vmatpush.msra.mxu0 0.0
    %1295 = vmatpush.msra.mxu0 0.0
    %1296 = vmatpush.msra.mxu0 0.0
    %1297 = vmatpush.msra.mxu0 0.0
    %1298 = vmatpush.msra.mxu0 0.0
    %1299 = vmatpush.msra.mxu0 %v177
    %1300 = vmatpush.msra.mxu0 %v174
    %1301 = vmatmul.f32.gmra.mxu0 %v1280
    %v1302 = vpop.f32.mrf.mxu0
    %v1303 = vadd.f32 0.0, %v1302
    %1304 = vmatmul.f32.gmra.mxu0 %v1283
    %v1305 = vpop.f32.mrf.mxu0
    %v1306 = vadd.f32 0.0, %v1305
    %1307 = vdwg.mxu0
    %v1309 = vsel %vm926, %v1249, 0
    %v1312 = vsel %vm926, %v1250, 0
    %1314 = vmatpush.msra.mxu0 0.0
    %1315 = vmatpush.msra.mxu0 0.0
    %1316 = vmatpush.msra.mxu0 0.0
    %1317 = vmatpush.msra.mxu0 0.0
    %1318 = vmatpush.msra.mxu0 0.0
    %1319 = vmatpush.msra.mxu0 0.0
    %1320 = vmatpush.msra.mxu0 0.0
    %1321 = vmatpush.msra.mxu0 0.0
    %1322 = vmatpush.msra.mxu0 0.0
    %1323 = vmatpush.msra.mxu0 0.0
    %1324 = vmatpush.msra.mxu0 0.0
    %1325 = vmatpush.msra.mxu0 0.0
    %1326 = vmatpush.msra.mxu0 0.0
    %1327 = vmatpush.msra.mxu0 0.0
    %1328 = vmatpush.msra.mxu0 %v183
    %1329 = vmatpush.msra.mxu0 %v180
    %1330 = vmatmul.f32.gmra.mxu0 %v1309
    %v1331 = vpop.f32.mrf.mxu0
    %v1332 = vadd.f32 0.0, %v1331
    %1333 = vmatmul.f32.gmra.mxu0 %v1312
    %v1334 = vpop.f32.mrf.mxu0
    %v1335 = vadd.f32 0.0, %v1334
    %1336 = vdwg.mxu0
    %v1338 = vsel %vm926, %v1251, 0
    %v1341 = vsel %vm926, %v1252, 0
    %1343 = vmatpush.msra.mxu0 0.0
    %1344 = vmatpush.msra.mxu0 0.0
    %1345 = vmatpush.msra.mxu0 0.0
    %1346 = vmatpush.msra.mxu0 0.0
    %1347 = vmatpush.msra.mxu0 0.0
    %1348 = vmatpush.msra.mxu0 0.0
    %1349 = vmatpush.msra.mxu0 0.0
    %1350 = vmatpush.msra.mxu0 0.0
    %1351 = vmatpush.msra.mxu0 0.0
    %1352 = vmatpush.msra.mxu0 0.0
    %1353 = vmatpush.msra.mxu0 0.0
    %1354 = vmatpush.msra.mxu0 0.0
    %1355 = vmatpush.msra.mxu0 0.0
    %1356 = vmatpush.msra.mxu0 0.0
    %1357 = vmatpush.msra.mxu0 %v252
    %1358 = vmatpush.msra.mxu0 %v250
    %1359 = vmatmul.f32.gmra.mxu0 %v1338
    %v1360 = vpop.f32.mrf.mxu0
    %v1361 = vadd.f32 0.0, %v1360
    %1362 = vmatmul.f32.gmra.mxu0 %v1341
    %v1363 = vpop.f32.mrf.mxu0
    %v1364 = vadd.f32 0.0, %v1363
    %1365 = vdwg.mxu0
    %v1367 = vsel %vm926, %v1253, 0
    %v1370 = vsel %vm926, %v1254, 0
    %1372 = vmatpush.msra.mxu0 0.0
    %1373 = vmatpush.msra.mxu0 0.0
    %1374 = vmatpush.msra.mxu0 0.0
    %1375 = vmatpush.msra.mxu0 0.0
    %1376 = vmatpush.msra.mxu0 0.0
    %1377 = vmatpush.msra.mxu0 0.0
    %1378 = vmatpush.msra.mxu0 0.0
    %1379 = vmatpush.msra.mxu0 0.0
    %1380 = vmatpush.msra.mxu0 0.0
    %1381 = vmatpush.msra.mxu0 0.0
    %1382 = vmatpush.msra.mxu0 0.0
    %1383 = vmatpush.msra.mxu0 0.0
    %1384 = vmatpush.msra.mxu0 0.0
    %1385 = vmatpush.msra.mxu0 0.0
    %1386 = vmatpush.msra.mxu0 %v256
    %1387 = vmatpush.msra.mxu0 %v254
    %1388 = vmatmul.f32.gmra.mxu0 %v1367
    %v1389 = vpop.f32.mrf.mxu0
    %v1390 = vadd.f32 0.0, %v1389
    %1391 = vmatmul.f32.gmra.mxu0 %v1370
    %v1392 = vpop.f32.mrf.mxu0
    %v1393 = vadd.f32 0.0, %v1392
    %1394 = vdwg.mxu0
    %v1396 = vsel %vm926, %v1255, 0
    %v1399 = vsel %vm926, %v1256, 0
    %1401 = vmatpush.msra.mxu0 0.0
    %1402 = vmatpush.msra.mxu0 0.0
    %1403 = vmatpush.msra.mxu0 0.0
    %1404 = vmatpush.msra.mxu0 0.0
    %1405 = vmatpush.msra.mxu0 0.0
    %1406 = vmatpush.msra.mxu0 0.0
    %1407 = vmatpush.msra.mxu0 0.0
    %1408 = vmatpush.msra.mxu0 0.0
    %1409 = vmatpush.msra.mxu0 0.0
    %1410 = vmatpush.msra.mxu0 0.0
    %1411 = vmatpush.msra.mxu0 0.0
    %1412 = vmatpush.msra.mxu0 0.0
    %1413 = vmatpush.msra.mxu0 0.0
    %1414 = vmatpush.msra.mxu0 0.0
    %1415 = vmatpush.msra.mxu0 %v264
    %1416 = vmatpush.msra.mxu0 %v262
    %1417 = vmatmul.f32.gmra.mxu0 %v1396
    %v1418 = vpop.f32.mrf.mxu0
    %v1419 = vadd.f32 0.0, %v1418
    %1420 = vmatmul.f32.gmra.mxu0 %v1399
    %v1421 = vpop.f32.mrf.mxu0
    %v1422 = vadd.f32 0.0, %v1421
    %1423 = vdwg.mxu0
    %v1425 = vsel %vm926, %v1257, 0
    %v1428 = vsel %vm926, %v1258, 0
    %1430 = vmatpush.msra.mxu0 0.0
    %1431 = vmatpush.msra.mxu0 0.0
    %1432 = vmatpush.msra.mxu0 0.0
    %1433 = vmatpush.msra.mxu0 0.0
    %1434 = vmatpush.msra.mxu0 0.0
    %1435 = vmatpush.msra.mxu0 0.0
    %1436 = vmatpush.msra.mxu0 0.0
    %1437 = vmatpush.msra.mxu0 0.0
    %1438 = vmatpush.msra.mxu0 0.0
    %1439 = vmatpush.msra.mxu0 0.0
    %1440 = vmatpush.msra.mxu0 0.0
    %1441 = vmatpush.msra.mxu0 0.0
    %1442 = vmatpush.msra.mxu0 0.0
    %1443 = vmatpush.msra.mxu0 0.0
    %1444 = vmatpush.msra.mxu0 %v268
    %1445 = vmatpush.msra.mxu0 %v266
    %1446 = vmatmul.f32.gmra.mxu0 %v1425
    %v1447 = vpop.f32.mrf.mxu0
    %v1448 = vadd.f32 0.0, %v1447
    %1449 = vmatmul.f32.gmra.mxu0 %v1428
    %v1450 = vpop.f32.mrf.mxu0
    %v1451 = vadd.f32 0.0, %v1450
    %1452 = vdwg.mxu0
    %v1454 = vsel %vm926, %v1259, 0
    %v1457 = vsel %vm926, %v1260, 0
    %1459 = vmatpush.msra.mxu0 0.0
    %1460 = vmatpush.msra.mxu0 0.0
    %1461 = vmatpush.msra.mxu0 0.0
    %1462 = vmatpush.msra.mxu0 0.0
    %1463 = vmatpush.msra.mxu0 0.0
    %1464 = vmatpush.msra.mxu0 0.0
    %1465 = vmatpush.msra.mxu0 0.0
    %1466 = vmatpush.msra.mxu0 0.0
    %1467 = vmatpush.msra.mxu0 0.0
    %1468 = vmatpush.msra.mxu0 0.0
    %1469 = vmatpush.msra.mxu0 0.0
    %1470 = vmatpush.msra.mxu0 0.0
    %1471 = vmatpush.msra.mxu0 0.0
    %1472 = vmatpush.msra.mxu0 0.0
    %1473 = vmatpush.msra.mxu0 %v276
    %1474 = vmatpush.msra.mxu0 %v274
    %1475 = vmatmul.f32.gmra.mxu0 %v1454
    %v1476 = vpop.f32.mrf.mxu0
    %v1477 = vadd.f32 0.0, %v1476
    %1478 = vmatmul.f32.gmra.mxu0 %v1457
    %v1479 = vpop.f32.mrf.mxu0
    %v1480 = vadd.f32 0.0, %v1479
    %1481 = vdwg.mxu0
    %v1483 = vsel %vm926, %v1261, 0
    %v1486 = vsel %vm926, %v1262, 0
    %1488 = vmatpush.msra.mxu0 0.0
    %1489 = vmatpush.msra.mxu0 0.0
    %1490 = vmatpush.msra.mxu0 0.0
    %1491 = vmatpush.msra.mxu0 0.0
    %1492 = vmatpush.msra.mxu0 0.0
    %1493 = vmatpush.msra.mxu0 0.0
    %1494 = vmatpush.msra.mxu0 0.0
    %1495 = vmatpush.msra.mxu0 0.0
    %1496 = vmatpush.msra.mxu0 0.0
    %1497 = vmatpush.msra.mxu0 0.0
    %1498 = vmatpush.msra.mxu0 0.0
    %1499 = vmatpush.msra.mxu0 0.0
    %1500 = vmatpush.msra.mxu0 0.0
    %1501 = vmatpush.msra.mxu0 0.0
    %1502 = vmatpush.msra.mxu0 %v280
    %1503 = vmatpush.msra.mxu0 %v278
    %1504 = vmatmul.f32.gmra.mxu0 %v1483
    %v1505 = vpop.f32.mrf.mxu0
    %v1506 = vadd.f32 0.0, %v1505
    %1507 = vmatmul.f32.gmra.mxu0 %v1486
    %v1508 = vpop.f32.mrf.mxu0
    %v1509 = vadd.f32 0.0, %v1508
    %1510 = vdwg.mxu0
    %v1512 = vsel %vm926, %v1263, 0
    %v1515 = vsel %vm926, %v1264, 0
    %1517 = vmatpush.msra.mxu0 0.0
    %1518 = vmatpush.msra.mxu0 0.0
    %1519 = vmatpush.msra.mxu0 0.0
    %1520 = vmatpush.msra.mxu0 0.0
    %1521 = vmatpush.msra.mxu0 0.0
    %1522 = vmatpush.msra.mxu0 0.0
    %1523 = vmatpush.msra.mxu0 0.0
    %1524 = vmatpush.msra.mxu0 0.0
    %1525 = vmatpush.msra.mxu0 0.0
    %1526 = vmatpush.msra.mxu0 0.0
    %1527 = vmatpush.msra.mxu0 0.0
    %1528 = vmatpush.msra.mxu0 0.0
    %1529 = vmatpush.msra.mxu0 0.0
    %1530 = vmatpush.msra.mxu0 0.0
    %1531 = vmatpush.msra.mxu0 %v288
    %1532 = vmatpush.msra.mxu0 %v286
    %1533 = vmatmul.f32.gmra.mxu0 %v1512
    %v1534 = vpop.f32.mrf.mxu0
    %v1535 = vadd.f32 0.0, %v1534
    %1536 = vmatmul.f32.gmra.mxu0 %v1515
    %v1537 = vpop.f32.mrf.mxu0
    %v1538 = vadd.f32 0.0, %v1537
    %1539 = vdwg.mxu0
    %v1541 = vsel %vm926, %v1265, 0
    %v1544 = vsel %vm926, %v1266, 0
    %1546 = vmatpush.msra.mxu0 0.0
    %1547 = vmatpush.msra.mxu0 0.0
    %1548 = vmatpush.msra.mxu0 0.0
    %1549 = vmatpush.msra.mxu0 0.0
    %1550 = vmatpush.msra.mxu0 0.0
    %1551 = vmatpush.msra.mxu0 0.0
    %1552 = vmatpush.msra.mxu0 0.0
    %1553 = vmatpush.msra.mxu0 0.0
    %1554 = vmatpush.msra.mxu0 0.0
    %1555 = vmatpush.msra.mxu0 0.0
    %1556 = vmatpush.msra.mxu0 0.0
    %1557 = vmatpush.msra.mxu0 0.0
    %1558 = vmatpush.msra.mxu0 0.0
    %1559 = vmatpush.msra.mxu0 0.0
    %1560 = vmatpush.msra.mxu0 %v292
    %1561 = vmatpush.msra.mxu0 %v290
    %1562 = vmatmul.f32.gmra.mxu0 %v1541
    %v1563 = vpop.f32.mrf.mxu0
    %v1564 = vadd.f32 0.0, %v1563
    %1565 = vmatmul.f32.gmra.mxu0 %v1544
    %v1566 = vpop.f32.mrf.mxu0
    %v1567 = vadd.f32 0.0, %v1566
    %1568 = vdwg.mxu0
    %v1570 = vsel %vm926, %v1267, 0
    %v1573 = vsel %vm926, %v1268, 0
    %1575 = vmatpush.msra.mxu0 0.0
    %1576 = vmatpush.msra.mxu0 0.0
    %1577 = vmatpush.msra.mxu0 0.0
    %1578 = vmatpush.msra.mxu0 0.0
    %1579 = vmatpush.msra.mxu0 0.0
    %1580 = vmatpush.msra.mxu0 0.0
    %1581 = vmatpush.msra.mxu0 0.0
    %1582 = vmatpush.msra.mxu0 0.0
    %1583 = vmatpush.msra.mxu0 0.0
    %1584 = vmatpush.msra.mxu0 0.0
    %1585 = vmatpush.msra.mxu0 0.0
    %1586 = vmatpush.msra.mxu0 0.0
    %1587 = vmatpush.msra.mxu0 0.0
    %1588 = vmatpush.msra.mxu0 0.0
    %1589 = vmatpush.msra.mxu0 %v300
    %1590 = vmatpush.msra.mxu0 %v298
    %1591 = vmatmul.f32.gmra.mxu0 %v1570
    %v1592 = vpop.f32.mrf.mxu0
    %v1593 = vadd.f32 0.0, %v1592
    %1594 = vmatmul.f32.gmra.mxu0 %v1573
    %v1595 = vpop.f32.mrf.mxu0
    %v1596 = vadd.f32 0.0, %v1595
    %1597 = vdwg.mxu0
    %v1599 = vsel %vm926, %v1269, 0
    %v1602 = vsel %vm926, %v1270, 0
    %1604 = vmatpush.msra.mxu0 0.0
    %1605 = vmatpush.msra.mxu0 0.0
    %1606 = vmatpush.msra.mxu0 0.0
    %1607 = vmatpush.msra.mxu0 0.0
    %1608 = vmatpush.msra.mxu0 0.0
    %1609 = vmatpush.msra.mxu0 0.0
    %1610 = vmatpush.msra.mxu0 0.0
    %1611 = vmatpush.msra.mxu0 0.0
    %1612 = vmatpush.msra.mxu0 0.0
    %1613 = vmatpush.msra.mxu0 0.0
    %1614 = vmatpush.msra.mxu0 0.0
    %1615 = vmatpush.msra.mxu0 0.0
    %1616 = vmatpush.msra.mxu0 0.0
    %1617 = vmatpush.msra.mxu0 0.0
    %1618 = vmatpush.msra.mxu0 %v304
    %1619 = vmatpush.msra.mxu0 %v302
    %1620 = vmatmul.f32.gmra.mxu0 %v1599
    %v1621 = vpop.f32.mrf.mxu0
    %v1622 = vadd.f32 0.0, %v1621
    %1623 = vmatmul.f32.gmra.mxu0 %v1602
    %v1624 = vpop.f32.mrf.mxu0
    %v1625 = vadd.f32 0.0, %v1624
    %1626 = vdwg.mxu0
    %v1628 = vsel %vm926, %v1271, 0
    %v1631 = vsel %vm926, %v1272, 0
    %1633 = vmatpush.msra.mxu0 0.0
    %1634 = vmatpush.msra.mxu0 0.0
    %1635 = vmatpush.msra.mxu0 0.0
    %1636 = vmatpush.msra.mxu0 0.0
    %1637 = vmatpush.msra.mxu0 0.0
    %1638 = vmatpush.msra.mxu0 0.0
    %1639 = vmatpush.msra.mxu0 0.0
    %1640 = vmatpush.msra.mxu0 0.0
    %1641 = vmatpush.msra.mxu0 0.0
    %1642 = vmatpush.msra.mxu0 0.0
    %1643 = vmatpush.msra.mxu0 0.0
    %1644 = vmatpush.msra.mxu0 0.0
    %1645 = vmatpush.msra.mxu0 0.0
    %1646 = vmatpush.msra.mxu0 0.0
    %1647 = vmatpush.msra.mxu0 %v312
    %1648 = vmatpush.msra.mxu0 %v310
    %1649 = vmatmul.f32.gmra.mxu0 %v1628
    %v1650 = vpop.f32.mrf.mxu0
    %v1651 = vadd.f32 0.0, %v1650
    %1652 = vmatmul.f32.gmra.mxu0 %v1631
    %v1653 = vpop.f32.mrf.mxu0
    %v1654 = vadd.f32 0.0, %v1653
    %1655 = vdwg.mxu0
    %v1657 = vsel %vm926, %v1273, 0
    %v1660 = vsel %vm926, %v1274, 0
    %1662 = vmatpush.msra.mxu0 0.0
    %1663 = vmatpush.msra.mxu0 0.0
    %1664 = vmatpush.msra.mxu0 0.0
    %1665 = vmatpush.msra.mxu0 0.0
    %1666 = vmatpush.msra.mxu0 0.0
    %1667 = vmatpush.msra.mxu0 0.0
    %1668 = vmatpush.msra.mxu0 0.0
    %1669 = vmatpush.msra.mxu0 0.0
    %1670 = vmatpush.msra.mxu0 0.0
    %1671 = vmatpush.msra.mxu0 0.0
    %1672 = vmatpush.msra.mxu0 0.0
    %1673 = vmatpush.msra.mxu0 0.0
    %1674 = vmatpush.msra.mxu0 0.0
    %1675 = vmatpush.msra.mxu0 0.0
    %1676 = vmatpush.msra.mxu0 %v316
    %1677 = vmatpush.msra.mxu0 %v314
    %1678 = vmatmul.f32.gmra.mxu0 %v1657
    %v1679 = vpop.f32.mrf.mxu0
    %v1680 = vadd.f32 0.0, %v1679
    %1681 = vmatmul.f32.gmra.mxu0 %v1660
    %v1682 = vpop.f32.mrf.mxu0
    %v1683 = vadd.f32 0.0, %v1682
    %1684 = vdwg.mxu0
    %v1686 = vsel %vm926, %v1275, 0
    %v1689 = vsel %vm926, %v1276, 0
    %1691 = vmatpush.msra.mxu0 0.0
    %1692 = vmatpush.msra.mxu0 0.0
    %1693 = vmatpush.msra.mxu0 0.0
    %1694 = vmatpush.msra.mxu0 0.0
    %1695 = vmatpush.msra.mxu0 0.0
    %1696 = vmatpush.msra.mxu0 0.0
    %1697 = vmatpush.msra.mxu0 0.0
    %1698 = vmatpush.msra.mxu0 0.0
    %1699 = vmatpush.msra.mxu0 0.0
    %1700 = vmatpush.msra.mxu0 0.0
    %1701 = vmatpush.msra.mxu0 0.0
    %1702 = vmatpush.msra.mxu0 0.0
    %1703 = vmatpush.msra.mxu0 0.0
    %1704 = vmatpush.msra.mxu0 0.0
    %1705 = vmatpush.msra.mxu0 %v324
    %1706 = vmatpush.msra.mxu0 %v322
    %1707 = vmatmul.f32.gmra.mxu0 %v1686
    %v1708 = vpop.f32.mrf.mxu0
    %v1709 = vadd.f32 0.0, %v1708
    %1710 = vmatmul.f32.gmra.mxu0 %v1689
    %v1711 = vpop.f32.mrf.mxu0
    %v1712 = vadd.f32 0.0, %v1711
    %1713 = vdwg.mxu0
    %v1715 = vsel %vm926, %v1277, 0
    %v1718 = vsel %vm926, %v1278, 0
    %1720 = vmatpush.msra.mxu0 0.0
    %1721 = vmatpush.msra.mxu0 0.0
    %1722 = vmatpush.msra.mxu0 0.0
    %1723 = vmatpush.msra.mxu0 0.0
    %1724 = vmatpush.msra.mxu0 0.0
    %1725 = vmatpush.msra.mxu0 0.0
    %1726 = vmatpush.msra.mxu0 0.0
    %1727 = vmatpush.msra.mxu0 0.0
    %1728 = vmatpush.msra.mxu0 0.0
    %1729 = vmatpush.msra.mxu0 0.0
    %1730 = vmatpush.msra.mxu0 0.0
    %1731 = vmatpush.msra.mxu0 0.0
    %1732 = vmatpush.msra.mxu0 0.0
    %1733 = vmatpush.msra.mxu0 0.0
    %1734 = vmatpush.msra.mxu0 %v328
    %1735 = vmatpush.msra.mxu0 %v326
    %1736 = vmatmul.f32.gmra.mxu0 %v1715
    %v1737 = vpop.f32.mrf.mxu0
    %v1738 = vadd.f32 0.0, %v1737
    %1739 = vmatmul.f32.gmra.mxu0 %v1718
    %v1740 = vpop.f32.mrf.mxu0
    %v1741 = vadd.f32 0.0, %v1740
    %1742 = vdwg.mxu0
    %v1743 = vld [vmem:[#allocation8] sm:$0xff]
    %v1744 = vld [vmem:[#allocation8 + $0x8] sm:$0xff]
    %v1745 = vld [vmem:[#allocation8 + $0x10] sm:$0xff]
    %v1746 = vld [vmem:[#allocation8 + $0x18] sm:$0xff]
    %v1747 = vld [vmem:[#allocation8 + $0x20] sm:$0xff]
    %v1748 = vld [vmem:[#allocation8 + $0x28] sm:$0xff]
    %v1749 = vld [vmem:[#allocation8 + $0x30] sm:$0xff]
    %v1750 = vld [vmem:[#allocation8 + $0x38] sm:$0xff]
    %v1752 = vsel %vm337, %v1303, 0
    %v1755 = vsel %vm337, %v1306, 0
    %v1758 = vsel %vm337, %v1332, 0
    %v1761 = vsel %vm337, %v1335, 0
    %1763 = vmatpush.msra.mxu0 0.0
    %1764 = vmatpush.msra.mxu0 0.0
    %1765 = vmatpush.msra.mxu0 0.0
    %1766 = vmatpush.msra.mxu0 0.0
    %1767 = vmatpush.msra.mxu0 0.0
    %1768 = vmatpush.msra.mxu0 0.0
    %1769 = vmatpush.msra.mxu0 0.0
    %1770 = vmatpush.msra.mxu0 0.0
    %1771 = vmatpush.msra.mxu0 0.0
    %1772 = vmatpush.msra.mxu0 0.0
    %1773 = vmatpush.msra.mxu0 0.0
    %1774 = vmatpush.msra.mxu0 0.0
    %1775 = vmatpush.msra.mxu0 0.0
    %1776 = vmatpush.msra.mxu0 0.0
    %1777 = vmatpush.msra.mxu0 0.0
    %1778 = vmatpush.msra.mxu0 %v1743
    %1779 = vmatmul.f32.gmra.mxu0 %v1752
    %v1780 = vpop.f32.mrf.mxu0
    %v1781 = vadd.f32 0.0, %v1780
    %1782 = vmatmul.f32.gmra.mxu0 %v1755
    %v1783 = vpop.f32.mrf.mxu0
    %v1784 = vadd.f32 0.0, %v1783
    %1785 = vmatmul.f32.gmra.mxu0 %v1758
    %v1786 = vpop.f32.mrf.mxu0
    %v1787 = vadd.f32 0.0, %v1786
    %1788 = vmatmul.f32.gmra.mxu0 %v1761
    %v1789 = vpop.f32.mrf.mxu0
    %v1790 = vadd.f32 0.0, %v1789
    %1791 = vdwg.mxu0
    %v1793 = vsel %vm337, %v1361, 0
    %v1796 = vsel %vm337, %v1364, 0
    %v1799 = vsel %vm337, %v1390, 0
    %v1802 = vsel %vm337, %v1393, 0
    %1804 = vmatpush.msra.mxu0 0.0
    %1805 = vmatpush.msra.mxu0 0.0
    %1806 = vmatpush.msra.mxu0 0.0
    %1807 = vmatpush.msra.mxu0 0.0
    %1808 = vmatpush.msra.mxu0 0.0
    %1809 = vmatpush.msra.mxu0 0.0
    %1810 = vmatpush.msra.mxu0 0.0
    %1811 = vmatpush.msra.mxu0 0.0
    %1812 = vmatpush.msra.mxu0 0.0
    %1813 = vmatpush.msra.mxu0 0.0
    %1814 = vmatpush.msra.mxu0 0.0
    %1815 = vmatpush.msra.mxu0 0.0
    %1816 = vmatpush.msra.mxu0 0.0
    %1817 = vmatpush.msra.mxu0 0.0
    %1818 = vmatpush.msra.mxu0 0.0
    %1819 = vmatpush.msra.mxu0 %v1744
    %1820 = vmatmul.f32.gmra.mxu0 %v1793
    %v1821 = vpop.f32.mrf.mxu0
    %v1822 = vadd.f32 0.0, %v1821
    %1823 = vmatmul.f32.gmra.mxu0 %v1796
    %v1824 = vpop.f32.mrf.mxu0
    %v1825 = vadd.f32 0.0, %v1824
    %1826 = vmatmul.f32.gmra.mxu0 %v1799
    %v1827 = vpop.f32.mrf.mxu0
    %v1828 = vadd.f32 0.0, %v1827
    %1829 = vmatmul.f32.gmra.mxu0 %v1802
    %v1830 = vpop.f32.mrf.mxu0
    %v1831 = vadd.f32 0.0, %v1830
    %1832 = vdwg.mxu0
    %v1834 = vsel %vm337, %v1419, 0
    %v1837 = vsel %vm337, %v1422, 0
    %v1840 = vsel %vm337, %v1448, 0
    %v1843 = vsel %vm337, %v1451, 0
    %1845 = vmatpush.msra.mxu0 0.0
    %1846 = vmatpush.msra.mxu0 0.0
    %1847 = vmatpush.msra.mxu0 0.0
    %1848 = vmatpush.msra.mxu0 0.0
    %1849 = vmatpush.msra.mxu0 0.0
    %1850 = vmatpush.msra.mxu0 0.0
    %1851 = vmatpush.msra.mxu0 0.0
    %1852 = vmatpush.msra.mxu0 0.0
    %1853 = vmatpush.msra.mxu0 0.0
    %1854 = vmatpush.msra.mxu0 0.0
    %1855 = vmatpush.msra.mxu0 0.0
    %1856 = vmatpush.msra.mxu0 0.0
    %1857 = vmatpush.msra.mxu0 0.0
    %1858 = vmatpush.msra.mxu0 0.0
    %1859 = vmatpush.msra.mxu0 0.0
    %1860 = vmatpush.msra.mxu0 %v1745
    %1861 = vmatmul.f32.gmra.mxu0 %v1834
    %v1862 = vpop.f32.mrf.mxu0
    %v1863 = vadd.f32 0.0, %v1862
    %1864 = vmatmul.f32.gmra.mxu0 %v1837
    %v1865 = vpop.f32.mrf.mxu0
    %v1866 = vadd.f32 0.0, %v1865
    %1867 = vmatmul.f32.gmra.mxu0 %v1840
    %v1868 = vpop.f32.mrf.mxu0
    %v1869 = vadd.f32 0.0, %v1868
    %1870 = vmatmul.f32.gmra.mxu0 %v1843
    %v1871 = vpop.f32.mrf.mxu0
    %v1872 = vadd.f32 0.0, %v1871
    %1873 = vdwg.mxu0
    %v1875 = vsel %vm337, %v1477, 0
    %v1878 = vsel %vm337, %v1480, 0
    %v1881 = vsel %vm337, %v1506, 0
    %v1884 = vsel %vm337, %v1509, 0
    %1886 = vmatpush.msra.mxu0 0.0
    %1887 = vmatpush.msra.mxu0 0.0
    %1888 = vmatpush.msra.mxu0 0.0
    %1889 = vmatpush.msra.mxu0 0.0
    %1890 = vmatpush.msra.mxu0 0.0
    %1891 = vmatpush.msra.mxu0 0.0
    %1892 = vmatpush.msra.mxu0 0.0
    %1893 = vmatpush.msra.mxu0 0.0
    %1894 = vmatpush.msra.mxu0 0.0
    %1895 = vmatpush.msra.mxu0 0.0
    %1896 = vmatpush.msra.mxu0 0.0
    %1897 = vmatpush.msra.mxu0 0.0
    %1898 = vmatpush.msra.mxu0 0.0
    %1899 = vmatpush.msra.mxu0 0.0
    %1900 = vmatpush.msra.mxu0 0.0
    %1901 = vmatpush.msra.mxu0 %v1746
    %1902 = vmatmul.f32.gmra.mxu0 %v1875
    %v1903 = vpop.f32.mrf.mxu0
    %v1904 = vadd.f32 0.0, %v1903
    %1905 = vmatmul.f32.gmra.mxu0 %v1878
    %v1906 = vpop.f32.mrf.mxu0
    %v1907 = vadd.f32 0.0, %v1906
    %1908 = vmatmul.f32.gmra.mxu0 %v1881
    %v1909 = vpop.f32.mrf.mxu0
    %v1910 = vadd.f32 0.0, %v1909
    %1911 = vmatmul.f32.gmra.mxu0 %v1884
    %v1912 = vpop.f32.mrf.mxu0
    %v1913 = vadd.f32 0.0, %v1912
    %1914 = vdwg.mxu0
    %v1916 = vsel %vm337, %v1535, 0
    %v1919 = vsel %vm337, %v1538, 0
    %v1922 = vsel %vm337, %v1564, 0
    %v1925 = vsel %vm337, %v1567, 0
    %1927 = vmatpush.msra.mxu0 0.0
    %1928 = vmatpush.msra.mxu0 0.0
    %1929 = vmatpush.msra.mxu0 0.0
    %1930 = vmatpush.msra.mxu0 0.0
    %1931 = vmatpush.msra.mxu0 0.0
    %1932 = vmatpush.msra.mxu0 0.0
    %1933 = vmatpush.msra.mxu0 0.0
    %1934 = vmatpush.msra.mxu0 0.0
    %1935 = vmatpush.msra.mxu0 0.0
    %1936 = vmatpush.msra.mxu0 0.0
    %1937 = vmatpush.msra.mxu0 0.0
    %1938 = vmatpush.msra.mxu0 0.0
    %1939 = vmatpush.msra.mxu0 0.0
    %1940 = vmatpush.msra.mxu0 0.0
    %1941 = vmatpush.msra.mxu0 0.0
    %1942 = vmatpush.msra.mxu0 %v1747
    %1943 = vmatmul.f32.gmra.mxu0 %v1916
    %v1944 = vpop.f32.mrf.mxu0
    %v1945 = vadd.f32 0.0, %v1944
    %1946 = vmatmul.f32.gmra.mxu0 %v1919
    %v1947 = vpop.f32.mrf.mxu0
    %v1948 = vadd.f32 0.0, %v1947
    %1949 = vmatmul.f32.gmra.mxu0 %v1922
    %v1950 = vpop.f32.mrf.mxu0
    %v1951 = vadd.f32 0.0, %v1950
    %1952 = vmatmul.f32.gmra.mxu0 %v1925
    %v1953 = vpop.f32.mrf.mxu0
    %v1954 = vadd.f32 0.0, %v1953
    %1955 = vdwg.mxu0
    %v1957 = vsel %vm337, %v1593, 0
    %v1960 = vsel %vm337, %v1596, 0
    %v1963 = vsel %vm337, %v1622, 0
    %v1966 = vsel %vm337, %v1625, 0
    %1968 = vmatpush.msra.mxu0 0.0
    %1969 = vmatpush.msra.mxu0 0.0
    %1970 = vmatpush.msra.mxu0 0.0
    %1971 = vmatpush.msra.mxu0 0.0
    %1972 = vmatpush.msra.mxu0 0.0
    %1973 = vmatpush.msra.mxu0 0.0
    %1974 = vmatpush.msra.mxu0 0.0
    %1975 = vmatpush.msra.mxu0 0.0
    %1976 = vmatpush.msra.mxu0 0.0
    %1977 = vmatpush.msra.mxu0 0.0
    %1978 = vmatpush.msra.mxu0 0.0
    %1979 = vmatpush.msra.mxu0 0.0
    %1980 = vmatpush.msra.mxu0 0.0
    %1981 = vmatpush.msra.mxu0 0.0
    %1982 = vmatpush.msra.mxu0 0.0
    %1983 = vmatpush.msra.mxu0 %v1748
    %1984 = vmatmul.f32.gmra.mxu0 %v1957
    %v1985 = vpop.f32.mrf.mxu0
    %v1986 = vadd.f32 0.0, %v1985
    %1987 = vmatmul.f32.gmra.mxu0 %v1960
    %v1988 = vpop.f32.mrf.mxu0
    %v1989 = vadd.f32 0.0, %v1988
    %1990 = vmatmul.f32.gmra.mxu0 %v1963
    %v1991 = vpop.f32.mrf.mxu0
    %v1992 = vadd.f32 0.0, %v1991
    %1993 = vmatmul.f32.gmra.mxu0 %v1966
    %v1994 = vpop.f32.mrf.mxu0
    %v1995 = vadd.f32 0.0, %v1994
    %1996 = vdwg.mxu0
    %v1998 = vsel %vm337, %v1651, 0
    %v2001 = vsel %vm337, %v1654, 0
    %v2004 = vsel %vm337, %v1680, 0
    %v2007 = vsel %vm337, %v1683, 0
    %2009 = vmatpush.msra.mxu0 0.0
    %2010 = vmatpush.msra.mxu0 0.0
    %2011 = vmatpush.msra.mxu0 0.0
    %2012 = vmatpush.msra.mxu0 0.0
    %2013 = vmatpush.msra.mxu0 0.0
    %2014 = vmatpush.msra.mxu0 0.0
    %2015 = vmatpush.msra.mxu0 0.0
    %2016 = vmatpush.msra.mxu0 0.0
    %2017 = vmatpush.msra.mxu0 0.0
    %2018 = vmatpush.msra.mxu0 0.0
    %2019 = vmatpush.msra.mxu0 0.0
    %2020 = vmatpush.msra.mxu0 0.0
    %2021 = vmatpush.msra.mxu0 0.0
    %2022 = vmatpush.msra.mxu0 0.0
    %2023 = vmatpush.msra.mxu0 0.0
    %2024 = vmatpush.msra.mxu0 %v1749
    %2025 = vmatmul.f32.gmra.mxu0 %v1998
    %v2026 = vpop.f32.mrf.mxu0
    %v2027 = vadd.f32 0.0, %v2026
    %2028 = vmatmul.f32.gmra.mxu0 %v2001
    %v2029 = vpop.f32.mrf.mxu0
    %v2030 = vadd.f32 0.0, %v2029
    %2031 = vmatmul.f32.gmra.mxu0 %v2004
    %v2032 = vpop.f32.mrf.mxu0
    %v2033 = vadd.f32 0.0, %v2032
    %2034 = vmatmul.f32.gmra.mxu0 %v2007
    %v2035 = vpop.f32.mrf.mxu0
    %v2036 = vadd.f32 0.0, %v2035
    %2037 = vdwg.mxu0
    %v2039 = vsel %vm337, %v1709, 0
    %v2042 = vsel %vm337, %v1712, 0
    %v2045 = vsel %vm337, %v1738, 0
    %v2048 = vsel %vm337, %v1741, 0
    %2050 = vmatpush.msra.mxu0 0.0
    %2051 = vmatpush.msra.mxu0 0.0
    %2052 = vmatpush.msra.mxu0 0.0
    %2053 = vmatpush.msra.mxu0 0.0
    %2054 = vmatpush.msra.mxu0 0.0
    %2055 = vmatpush.msra.mxu0 0.0
    %2056 = vmatpush.msra.mxu0 0.0
    %2057 = vmatpush.msra.mxu0 0.0
    %2058 = vmatpush.msra.mxu0 0.0
    %2059 = vmatpush.msra.mxu0 0.0
    %2060 = vmatpush.msra.mxu0 0.0
    %2061 = vmatpush.msra.mxu0 0.0
    %2062 = vmatpush.msra.mxu0 0.0
    %2063 = vmatpush.msra.mxu0 0.0
    %2064 = vmatpush.msra.mxu0 0.0
    %2065 = vmatpush.msra.mxu0 %v1750
    %2066 = vmatmul.f32.gmra.mxu0 %v2039
    %v2067 = vpop.f32.mrf.mxu0
    %v2068 = vadd.f32 0.0, %v2067
    %2069 = vmatmul.f32.gmra.mxu0 %v2042
    %v2070 = vpop.f32.mrf.mxu0
    %v2071 = vadd.f32 0.0, %v2070
    %2072 = vmatmul.f32.gmra.mxu0 %v2045
    %v2073 = vpop.f32.mrf.mxu0
    %v2074 = vadd.f32 0.0, %v2073
    %2075 = vmatmul.f32.gmra.mxu0 %v2048
    %v2076 = vpop.f32.mrf.mxu0
    %v2077 = vadd.f32 0.0, %v2076
    %2078 = vdwg.mxu0
    %v2079 = vsel %vm114, %v1781, 0.0
    %v2080 = vsel %vm114, %v1822, 0.0
    %v2081 = vadd.f32 %v2079, %v2080
    %v2082 = vsel %vm114, %v1863, 0.0
    %v2083 = vadd.f32 %v2081, %v2082
    %v2084 = vsel %vm114, %v1904, 0.0
    %v2085 = vadd.f32 %v2083, %v2084
    %v2086 = vsel %vm114, %v1945, 0.0
    %v2087 = vadd.f32 %v2085, %v2086
    %v2088 = vsel %vm114, %v1986, 0.0
    %v2089 = vadd.f32 %v2087, %v2088
    %v2090 = vsel %vm114, %v2027, 0.0
    %v2091 = vadd.f32 %v2089, %v2090
    %v2092 = vsel %vm114, %v2068, 0.0
    %v2093 = vadd.f32 %v2091, %v2092
    %v2094 = vsel %vm114, %v1784, 0.0
    %v2095 = vsel %vm114, %v1825, 0.0
    %v2096 = vadd.f32 %v2094, %v2095
    %v2097 = vsel %vm114, %v1866, 0.0
    %v2098 = vadd.f32 %v2096, %v2097
    %v2099 = vsel %vm114, %v1907, 0.0
    %v2100 = vadd.f32 %v2098, %v2099
    %v2101 = vsel %vm114, %v1948, 0.0
    %v2102 = vadd.f32 %v2100, %v2101
    %v2103 = vsel %vm114, %v1989, 0.0
    %v2104 = vadd.f32 %v2102, %v2103
    %v2105 = vsel %vm114, %v2030, 0.0
    %v2106 = vadd.f32 %v2104, %v2105
    %v2107 = vsel %vm114, %v2071, 0.0
    %v2108 = vadd.f32 %v2106, %v2107
    %v2109 = vsel %vm114, %v1787, 0.0
    %v2110 = vsel %vm114, %v1828, 0.0
    %v2111 = vadd.f32 %v2109, %v2110
    %v2112 = vsel %vm114, %v1869, 0.0
    %v2113 = vadd.f32 %v2111, %v2112
    %v2114 = vsel %vm114, %v1910, 0.0
    %v2115 = vadd.f32 %v2113, %v2114
    %v2116 = vsel %vm114, %v1951, 0.0
    %v2117 = vadd.f32 %v2115, %v2116
    %v2118 = vsel %vm114, %v1992, 0.0
    %v2119 = vadd.f32 %v2117, %v2118
    %v2120 = vsel %vm114, %v2033, 0.0
    %v2121 = vadd.f32 %v2119, %v2120
    %v2122 = vsel %vm114, %v2074, 0.0
    %v2123 = vadd.f32 %v2121, %v2122
    %v2124 = vsel %vm114, %v1790, 0.0
    %v2125 = vsel %vm114, %v1831, 0.0
    %v2126 = vadd.f32 %v2124, %v2125
    %v2127 = vsel %vm114, %v1872, 0.0
    %v2128 = vadd.f32 %v2126, %v2127
    %v2129 = vsel %vm114, %v1913, 0.0
    %v2130 = vadd.f32 %v2128, %v2129
    %v2131 = vsel %vm114, %v1954, 0.0
    %v2132 = vadd.f32 %v2130, %v2131
    %v2133 = vsel %vm114, %v1995, 0.0
    %v2134 = vadd.f32 %v2132, %v2133
    %v2135 = vsel %vm114, %v2036, 0.0
    %v2136 = vadd.f32 %v2134, %v2135
    %v2137 = vsel %vm114, %v2077, 0.0
    %v2138 = vadd.f32 %v2136, %v2137
    %v2139 = vld [vmem:[%s4] sm:$0x1]
    %v2141 = vperm.slane %v2139, 0
    %v2143 = vadd.f32 %v2093, %v2141
    %v2144 = vadd.f32 %v2108, %v2141
    %v2145 = vadd.f32 %v2123, %v2141
    %v2146 = vadd.f32 %v2138, %v2141
    %v2147 = vadd.f32 %v88, %v2143
    %v2148 = vadd.f32 %v89, %v2144
    %v2149 = vadd.f32 %v90, %v2145
    %v2150 = vadd.f32 %v91, %v2146
    %v2151 = vsel %vm114, %v2147, 0.0
    %2152 = vadd.xlane.f32.xlu0 %v2151
    %v2153 = vpop.xlane.xlu0 %2152
    %v2154 = vsel %vm114, %v2148, 0.0
    %2155 = vadd.xlane.f32.xlu0 %v2154
    %v2156 = vpop.xlane.xlu0 %2155
    %v2157 = vsel %vm114, %v2149, 0.0
    %2158 = vadd.xlane.f32.xlu0 %v2157
    %v2159 = vpop.xlane.xlu0 %2158
    %v2160 = vsel %vm114, %v2150, 0.0
    %2161 = vadd.xlane.f32.xlu0 %v2160
    %v2162 = vpop.xlane.xlu0 %2161
    %v2163 = vrcp.pop 64.0
    %v2164 = vmul.f32 64.0, %v2163
    %v2165 = vsub.f32 1.0, %v2164
    %v2166 = vmul.f32 %v2163, %v2165
    %v2167 = vadd.f32 %v2163, %v2166
    %vm2168 = vweird.f32 %v2163
    %v2169 = vsel %vm2168, %v2163, %v2167
    %v2170 = vmul.f32 %v2153, %v2169
    %v2171 = vmul.f32 %v2156, %v2169
    %v2172 = vmul.f32 %v2159, %v2169
    %v2173 = vmul.f32 %v2162, %v2169
    %v2174 = vmul.f32 %v2147, %v2147
    %v2175 = vmul.f32 %v2148, %v2148
    %v2176 = vmul.f32 %v2149, %v2149
    %v2177 = vmul.f32 %v2150, %v2150
    %v2178 = vsel %vm114, %v2174, 0.0
    %2179 = vadd.xlane.f32.xlu0 %v2178
    %v2180 = vpop.xlane.xlu0 %2179
    %v2181 = vsel %vm114, %v2175, 0.0
    %2182 = vadd.xlane.f32.xlu0 %v2181
    %v2183 = vpop.xlane.xlu0 %2182
    %v2184 = vsel %vm114, %v2176, 0.0
    %2185 = vadd.xlane.f32.xlu0 %v2184
    %v2186 = vpop.xlane.xlu0 %2185
    %v2187 = vsel %vm114, %v2177, 0.0
    %2188 = vadd.xlane.f32.xlu0 %v2187
    %v2189 = vpop.xlane.xlu0 %2188
    %v2190 = vmul.f32 %v2180, %v2169
    %v2191 = vmul.f32 %v2183, %v2169
    %v2192 = vmul.f32 %v2186, %v2169
    %v2193 = vmul.f32 %v2189, %v2169
    %v2194 = vmul.f32 %v2170, %v2170
    %v2195 = vmul.f32 %v2171, %v2171
    %v2196 = vmul.f32 %v2172, %v2172
    %v2197 = vmul.f32 %v2173, %v2173
    %v2198 = vsub.f32 %v2190, %v2194
    %v2199 = vsub.f32 %v2191, %v2195
    %v2200 = vsub.f32 %v2192, %v2196
    %v2201 = vsub.f32 %v2193, %v2197
    %v2202 = vsub.f32 %v2147, %v2170
    %v2203 = vsub.f32 %v2148, %v2171
    %v2204 = vsub.f32 %v2149, %v2172
    %v2205 = vsub.f32 %v2150, %v2173
    %v2206 = vadd.f32 %v2198, 1e-05
    %v2207 = vadd.f32 %v2199, 1e-05
    %v2208 = vadd.f32 %v2200, 1e-05
    %v2209 = vadd.f32 %v2201, 1e-05
    %v2210 = vrsqrt.pop %v2206
    %v2211 = vmul.f32 %v2210, %v2206
    %v2212 = vmul.f32 %v2211, %v2210
    %v2213 = vmul.f32 0.5, %v2212
    %v2214 = vsub.f32 1.5, %v2213
    %v2215 = vmul.f32 %v2210, %v2214
    %vm2216 = vweird.f32 %v2206
    %vm2217 = vweird.f32 %v2210
    %vm2218 = vmor %vm2216, %vm2217
    %v2219 = vsel %vm2218, %v2210, %v2215
    %v2220 = vrsqrt.pop %v2207
    %v2221 = vmul.f32 %v2220, %v2207
    %v2222 = vmul.f32 %v2221, %v2220
    %v2223 = vmul.f32 0.5, %v2222
    %v2224 = vsub.f32 1.5, %v2223
    %v2225 = vmul.f32 %v2220, %v2224
    %vm2226 = vweird.f32 %v2207
    %vm2227 = vweird.f32 %v2220
    %vm2228 = vmor %vm2226, %vm2227
    %v2229 = vsel %vm2228, %v2220, %v2225
    %v2230 = vrsqrt.pop %v2208
    %v2231 = vmul.f32 %v2230, %v2208
    %v2232 = vmul.f32 %v2231, %v2230
    %v2233 = vmul.f32 0.5, %v2232
    %v2234 = vsub.f32 1.5, %v2233
    %v2235 = vmul.f32 %v2230, %v2234
    %vm2236 = vweird.f32 %v2208
    %vm2237 = vweird.f32 %v2230
    %vm2238 = vmor %vm2236, %vm2237
    %v2239 = vsel %vm2238, %v2230, %v2235
    %v2240 = vrsqrt.pop %v2209
    %v2241 = vmul.f32 %v2240, %v2209
    %v2242 = vmul.f32 %v2241, %v2240
    %v2243 = vmul.f32 0.5, %v2242
    %v2244 = vsub.f32 1.5, %v2243
    %v2245 = vmul.f32 %v2240, %v2244
    %vm2246 = vweird.f32 %v2209
    %vm2247 = vweird.f32 %v2240
    %vm2248 = vmor %vm2246, %vm2247
    %v2249 = vsel %vm2248, %v2240, %v2245
    %v2250 = vmul.f32 %v2202, %v2219
    %v2251 = vmul.f32 %v2203, %v2229
    %v2252 = vmul.f32 %v2204, %v2239
    %v2253 = vmul.f32 %v2205, %v2249
    %v2254 = vld [vmem:[%s5] sm:$0x1]
    %v2256 = vperm.slane %v2254, 0
    %v2258 = vmul.f32 %v2250, %v2256
    %v2259 = vmul.f32 %v2251, %v2256
    %v2260 = vmul.f32 %v2252, %v2256
    %v2261 = vmul.f32 %v2253, %v2256
    %v2262 = vld [vmem:[%s6] sm:$0x1]
    %v2264 = vperm.slane %v2262, 0
    %v2266 = vadd.f32 %v2258, %v2264
    %v2267 = vadd.f32 %v2259, %v2264
    %v2268 = vadd.f32 %v2260, %v2264
    %v2269 = vadd.f32 %v2261, %v2264
    %2270 = vst.msk [vmem:[#allocation10] sm:$0xff] %vm114, %v2266
    %2271 = vst.msk [vmem:[#allocation10 + $0x8] sm:$0xff] %vm114, %v2267
    %2272 = vst.msk [vmem:[#allocation10 + $0x10] sm:$0xff] %vm114, %v2268
    %2273 = vst.msk [vmem:[#allocation10 + $0x18] sm:$0xff] %vm114, %v2269
    // Predicated region
    $region46: #{tpu_custom_call.1} parent=1 // pred_check
      _
    $region47: #{tpu_custom_call.1} parent=1 // pred_check_branch
      %2275 = sbr.rel (0) target = $region49
    $region48: #{tpu_custom_call.1} parent=1 // pred_region
      %2277 = vsyncadd [#allocation4], 0
      %s2278 = sshll.u32 [#allocation10], 4
      %s2279 = int_to_ptr.vmem [resolvable:$true] %s2278
      %s2280 = sshll.u32 %s7, 4
      %s2281 = int_to_ptr.hbm [resolvable:$true] %s2280
      %2286 = dma.vmem_to_hbm [thread:$0]  %s2279, 512, %s2281, [#allocation4], 128, 128, 8
    $region49: #{tpu_custom_call.1} parent=1 // pred_fallthru
      _
    // Predicated region
    $region50: #{tpu_custom_call.1} parent=1 // pred_check
      _
    $region51: #{tpu_custom_call.1} parent=1 // pred_check_branch
      %2288 = sbr.rel (0) target = $region53
    $region52: #{tpu_custom_call.1} parent=1 // pred_region
      %2290 = dma.done [#allocation4], 512
    $region53: #{tpu_custom_call.1} parent=1 // pred_fallthru
      _
    %2291 = vsyncpa [#allocation3], 1
    %2292 = vsyncpa [#allocation6], 1
    %2293 = vsyncpa [#allocation9], 1
    %2294 = vsyncpa [#allocation4], 1

</llo_original>
